<compile_context>
chip_gen: v6e
topology: v6e:2x2x1
jax: 0.10.0
libtpu: 0.0.40
codegen_flags: <defaults>
</compile_context>

<pallas_src>
import functools

import jax
import jax.numpy as jnp
from jax.experimental import pallas as pl
from jax.experimental.pallas import tpu as pltpu

EPS = 1e-5
CONV_TILE_M = 512       # rows per implicit-GEMM conv grid step (upper bound)
IM2COL_TILE_M = 256     # rows per downsample-conv grid step (upper bound)
EW_TILE_M = 2048        # rows per elementwise (BN-apply) grid step (upper bound)


def _vmem_limit():
    try:
        info = pltpu.get_tpu_info()
        cap = getattr(info, "vmem_capacity_bytes", None)
        if cap:
            return int(min(cap * 0.7, 64 * 1024 * 1024))
    except Exception:
        pass
    return 32 * 1024 * 1024


VMEM_LIMIT = _vmem_limit()


def _cparams():
    return pltpu.CompilerParams(
        dimension_semantics=("parallel",),
        vmem_limit_bytes=VMEM_LIMIT,
    )


def _cdiv(a, b):
    return -(-a // b)


# ----------------------------- Pallas kernels -----------------------------

def _flat_conv_kernel(xm_ref, x0_ref, xp_ref, mm_ref, m0_ref, mp_ref, w_ref,
                      o_ref, s_ref, ss_ref, *, offsets):
    """Implicit-GEMM 3x3 conv on a padded-flat row tile + BN partial stats."""
    tile, cin = x0_ref.shape
    cout = o_ref.shape[-1]
    # Row tile plus halo tiles on both sides; padding-ring rows are zeroed here so
    # garbage written by previous layers at ring positions never enters the conv.
    x = jnp.concatenate([xm_ref[...], x0_ref[...], xp_ref[...]], axis=0)
    m = jnp.concatenate([mm_ref[...], m0_ref[...], mp_ref[...]], axis=0)
    x = jnp.where(m > 0.5, x, jnp.zeros_like(x))                 # keep bf16
    acc = jnp.zeros((tile, cout), jnp.float32)
    for t, off in enumerate(offsets):                            # 9 taps, unrolled
        a = x[tile + off:2 * tile + off, :]                      # (tile, cin) bf16
        w = w_ref[t * cin:(t + 1) * cin, :]                      # (cin, cout) bf16
        acc = acc + jnp.dot(a, w, preferred_element_type=jnp.float32)
    o_ref[...] = acc.astype(o_ref.dtype)                         # bf16 writeback
    # One-pass BN partials over valid (non-ring) rows of this tile.
    masked = jnp.where(m0_ref[...] > 0.5, acc, 0.0)
    s_ref[...] = jnp.sum(masked, axis=0, keepdims=True)[None]
    ss_ref[...] = jnp.sum(masked * masked, axis=0, keepdims=True)[None]


def _mm_stats_kernel(a_ref, w_ref, o_ref, s_ref, ss_ref):
    """bf16 matmul tile (im2col path) + BN partial stats (padded rows are zero)."""
    acc = jnp.dot(a_ref[...], w_ref[...], preferred_element_type=jnp.float32)
    o_ref[...] = acc.astype(o_ref.dtype)
    s_ref[...] = jnp.sum(acc, axis=0, keepdims=True)[None]
    ss_ref[...] = jnp.sum(acc * acc, axis=0, keepdims=True)[None]


def _bn_apply_kernel(x_ref, scale_ref, shift_ref, o_ref, *, relu):
    y = x_ref[...].astype(jnp.float32) * scale_ref[...] + shift_ref[...]
    if relu:
        y = jnp.maximum(y, 0.0)
    o_ref[...] = y.astype(o_ref.dtype)


def _bn_apply_res_kernel(x_ref, scale_ref, shift_ref, r_ref, o_ref, *, relu):
    y = (x_ref[...].astype(jnp.float32) * scale_ref[...] + shift_ref[...]
         + r_ref[...].astype(jnp.float32))
    if relu:
        y = jnp.maximum(y, 0.0)
    o_ref[...] = y.astype(o_ref.dtype)


def _bn_dual_kernel(x_ref, s1_ref, b1_ref, s2_ref, b2_ref, o1_ref, o2_ref, *, c):
    """Split BN for the fused (conv1 | shortcut) matmul output: relu on half 1 only."""
    x = x_ref[...].astype(jnp.float32)
    y1 = jnp.maximum(x[:, :c] * s1_ref[...] + b1_ref[...], 0.0)
    y2 = x[:, c:] * s2_ref[...] + b2_ref[...]
    o1_ref[...] = y1.astype(o1_ref.dtype)
    o2_ref[...] = y2.astype(o2_ref.dtype)


def _bn_res_pool_fc_kernel(x_ref, scale_ref, shift_ref, r_ref, w_ref, b_ref, o_ref):
    """Final-block epilogue: BN + residual + ReLU + global avg-pool + Linear."""
    y = (x_ref[...].astype(jnp.float32) * scale_ref[...] + shift_ref[...]
         + r_ref[...].astype(jnp.float32))
    y = jnp.maximum(y, 0.0)                                      # (n_img, HW, C)
    pooled = jnp.mean(y, axis=1)                                 # (n_img, C)
    o_ref[...] = (jnp.dot(pooled.astype(jnp.bfloat16), w_ref[...],
                          preferred_element_type=jnp.float32) + b_ref[...])


# ------------------------------ tiling helpers ------------------------------

def _flat_tiles(m_valid, halo):
    """Row tile for the implicit-GEMM conv: >=4 grid steps when possible, >= halo."""
    t = CONV_TILE_M
    while t > 32 and _cdiv(m_valid, t) < 4:
        t //= 2
    halo_t = _cdiv(halo, 16) * 16
    t = max(t, halo_t, 16)
    nt = _cdiv(m_valid, t)
    return t, nt


def _ew_tiles(m, cap):
    """Tile + padded row count for matmul/elementwise passes on a padded array."""
    t = cap
    while t > 8 and _cdiv(m, t) < 4:
        t //= 2
    t = max(8, t - t % 8)
    nt = _cdiv(m, t)
    return t, nt * t


def _pick_divisor_tile(m, cap):
    """Largest multiple-of-8 divisor of m that is <= min(cap, m//4) (>=2 steps)."""
    target = max(8, min(cap, m // 4 if m >= 32 else m))
    t = max(8, target - target % 8)
    while m % t:
        t -= 8
    return t


# ------------------------------ JAX glue -------------------------------------

def make_mask(B, H, W, m_rows):
    """(m_rows, 1) f32 mask: 1 at valid pixels of the padded-flat layout, 0 at rings."""
    Hp, Wp = H + 2, W + 2
    row = (jnp.arange(Hp) >= 1) & (jnp.arange(Hp) <= H)
    col = (jnp.arange(Wp) >= 1) & (jnp.arange(Wp) <= W)
    valid = (row[:, None] & col[None, :]).astype(jnp.float32)
    m = jnp.broadcast_to(valid[None], (B, Hp, Wp)).reshape(B * Hp * Wp)
    m = jnp.pad(m, (0, m_rows - B * Hp * Wp))
    return m.reshape(m_rows, 1)


def stage_cfg(B, H, W):
    Hp, Wp = H + 2, W + 2
    m_valid = B * Hp * Wp
    halo = Wp + 1
    tile, nt = _flat_tiles(m_valid, halo)
    return dict(B=B, H=H, W=W, Hp=Hp, Wp=Wp, halo=halo, tile=tile, nt=nt,
                m=nt * tile, m_valid=m_valid, count=B * H * W,
                mask=make_mask(B, H, W, nt * tile))


def flat_conv(x_pf, mask, w, cfg):
    """Implicit-GEMM 3x3 stride-1 conv on a padded-flat activation.

    x_pf: (cfg['m'], Cin) bf16, w: (9*Cin, Cout) bf16.  Returns (conv bf16,
    per-channel sum, per-channel sum-of-squares) with stats over valid rows only.
    """
    mrows, cin = x_pf.shape
    cout = w.shape[1]
    T, nt, Wp = cfg['tile'], cfg['nt'], cfg['Wp']
    offsets = tuple((di - 1) * Wp + (dj - 1) for di in range(3) for dj in range(3))

    def im_prev(i):
        return (jnp.maximum(i - 1, 0), 0)

    def im_cur(i):
        return (i, 0)

    def im_next(i):
        return (jnp.minimum(i + 1, nt - 1), 0)

    kernel = functools.partial(_flat_conv_kernel, offsets=offsets)
    conv, s, ss = pl.pallas_call(
        kernel,
        out_shape=(jax.ShapeDtypeStruct((mrows, cout), jnp.bfloat16),
                   jax.ShapeDtypeStruct((nt, 1, cout), jnp.float32),
                   jax.ShapeDtypeStruct((nt, 1, cout), jnp.float32)),
        grid=(nt,),
        in_specs=[pl.BlockSpec((T, cin), im_prev),
                  pl.BlockSpec((T, cin), im_cur),
                  pl.BlockSpec((T, cin), im_next),
                  pl.BlockSpec((T, 1), im_prev),
                  pl.BlockSpec((T, 1), im_cur),
                  pl.BlockSpec((T, 1), im_next),
                  pl.BlockSpec((9 * cin, cout), lambda i: (0, 0))],
        out_specs=(pl.BlockSpec((T, cout), lambda i: (i, 0)),
                   pl.BlockSpec((1, 1, cout), lambda i: (i, 0, 0)),
                   pl.BlockSpec((1, 1, cout), lambda i: (i, 0, 0))),
        compiler_params=_cparams(),
    )(x_pf, x_pf, x_pf, mask, mask, mask, w)
    return conv, jnp.sum(s[:, 0, :], axis=0), jnp.sum(ss[:, 0, :], axis=0)


def im2col(x, kh, kw, stride, padding):
    """x: (B,H,W,C) -> (B*Ho*Wo, kh*kw*C) patch matrix (tap-major, C fastest)."""
    B, H, W, C = x.shape
    if padding:
        x = jnp.pad(x, ((0, 0), (padding, padding), (padding, padding), (0, 0)))
    Hp, Wp = H + 2 * padding, W + 2 * padding
    Ho = (Hp - kh) // stride + 1
    Wo = (Wp - kw) // stride + 1
    cols = [x[:, i:i + stride * Ho:stride, j:j + stride * Wo:stride, :]
            for i in range(kh) for j in range(kw)]
    patches = jnp.concatenate(cols, axis=-1)
    return patches.reshape(B * Ho * Wo, kh * kw * C), Ho, Wo


def matmul_stats(patches, wmat):
    """Tiled bf16 matmul + BN partials (im2col / downsample path, zero-row padded)."""
    m_true, K = patches.shape
    cout = wmat.shape[1]
    T, mpad = _ew_tiles(m_true, IM2COL_TILE_M)
    if mpad != m_true:
        patches = jnp.pad(patches, ((0, mpad - m_true), (0, 0)))
    nt = mpad // T
    conv, s, ss = pl.pallas_call(
        _mm_stats_kernel,
        out_shape=(jax.ShapeDtypeStruct((mpad, cout), jnp.bfloat16),
                   jax.ShapeDtypeStruct((nt, 1, cout), jnp.float32),
                   jax.ShapeDtypeStruct((nt, 1, cout), jnp.float32)),
        grid=(nt,),
        in_specs=[pl.BlockSpec((T, K), lambda i: (i, 0)),
                  pl.BlockSpec((K, cout), lambda i: (0, 0))],
        out_specs=(pl.BlockSpec((T, cout), lambda i: (i, 0)),
                   pl.BlockSpec((1, 1, cout), lambda i: (i, 0, 0)),
                   pl.BlockSpec((1, 1, cout), lambda i: (i, 0, 0))),
        compiler_params=_cparams(),
    )(patches, wmat)
    return conv, jnp.sum(s[:, 0, :], axis=0), jnp.sum(ss[:, 0, :], axis=0)


def _scale_shift(s, ss, gamma, beta, n):
    mean = s / n
    var = jnp.maximum(ss / n - mean * mean, 0.0)     # biased batch var, clamped
    scale = gamma * jax.lax.rsqrt(var + EPS)
    shift = beta - mean * scale
    return scale, shift


def bn_apply(conv, scale, shift, residual=None, relu=True):
    """Tiled elementwise BN-apply (+residual, +relu), bf16 in/out, lane-packed view."""
    M, cout = conv.shape
    pack = 1
    if cout < 128 and 128 % cout == 0 and M % (128 // cout) == 0:
        pack = 128 // cout                           # e.g. (M,64) viewed as (M/2,128)
    Mp, Cp = M // pack, cout * pack
    x2 = conv.reshape(Mp, Cp)                        # free: identical row-major bytes
    scale2 = jnp.tile(scale, pack).reshape(1, Cp)
    shift2 = jnp.tile(shift, pack).reshape(1, Cp)
    T = _pick_divisor_tile(Mp, EW_TILE_M)
    nt = Mp // T

    args = [x2, scale2, shift2]
    in_specs = [pl.BlockSpec((T, Cp), lambda i: (i, 0)),
                pl.BlockSpec((1, Cp), lambda i: (0, 0)),
                pl.BlockSpec((1, Cp), lambda i: (0, 0))]
    if residual is None:
        kernel = functools.partial(_bn_apply_kernel, relu=relu)
    else:
        kernel = functools.partial(_bn_apply_res_kernel, relu=relu)
        args.append(residual.reshape(Mp, Cp))
        in_specs.append(pl.BlockSpec((T, Cp), lambda i: (i, 0)))

    out = pl.pallas_call(
        kernel,
        out_shape=jax.ShapeDtypeStruct((Mp, Cp), jnp.bfloat16),
        grid=(nt,),
        in_specs=in_specs,
        out_specs=pl.BlockSpec((T, Cp), lambda i: (i, 0)),
        compiler_params=_cparams(),
    )(*args)
    return out.reshape(M, cout)


def bn_dual(conv, scale1, shift1, scale2, shift2, cout):
    """Apply two BNs to the fused (conv1 | shortcut) matmul output in one pass."""
    M, ctot = conv.shape
    T = _pick_divisor_tile(M, EW_TILE_M)
    nt = M // T
    kernel = functools.partial(_bn_dual_kernel, c=cout)
    o1, o2 = pl.pallas_call(
        kernel,
        out_shape=(jax.ShapeDtypeStruct((M, cout), jnp.bfloat16),
                   jax.ShapeDtypeStruct((M, cout), jnp.bfloat16)),
        grid=(nt,),
        in_specs=[pl.BlockSpec((T, ctot), lambda i: (i, 0)),
                  pl.BlockSpec((1, cout), lambda i: (0, 0)),
                  pl.BlockSpec((1, cout), lambda i: (0, 0)),
                  pl.BlockSpec((1, cout), lambda i: (0, 0)),
                  pl.BlockSpec((1, cout), lambda i: (0, 0))],
        out_specs=(pl.BlockSpec((T, cout), lambda i: (i, 0)),
                   pl.BlockSpec((T, cout), lambda i: (i, 0))),
        compiler_params=_cparams(),
    )(conv, scale1.reshape(1, cout), shift1.reshape(1, cout),
      scale2.reshape(1, cout), shift2.reshape(1, cout))
    return o1, o2


def pool_fc(x, scale, shift, res, fc_w, fc_b):
    """Fused final epilogue: BN + residual + ReLU + global avg-pool + Linear."""
    B, hw, C = x.shape
    nc = fc_w.shape[1]
    n_img = B if (B < 16 or B % 8) else 8
    nt = B // n_img
    return pl.pallas_call(
        _bn_res_pool_fc_kernel,
        out_shape=jax.ShapeDtypeStruct((B, nc), jnp.float32),
        grid=(nt,),
        in_specs=[pl.BlockSpec((n_img, hw, C), lambda i: (i, 0, 0)),
                  pl.BlockSpec((1, 1, C), lambda i: (0, 0, 0)),
                  pl.BlockSpec((1, 1, C), lambda i: (0, 0, 0)),
                  pl.BlockSpec((n_img, hw, C), lambda i: (i, 0, 0)),
                  pl.BlockSpec((C, nc), lambda i: (0, 0)),
                  pl.BlockSpec((1, nc), lambda i: (0, 0))],
        out_specs=pl.BlockSpec((n_img, nc), lambda i: (i, 0)),
        compiler_params=_cparams(),
    )(x, scale.reshape(1, 1, C), shift.reshape(1, 1, C), res, fc_w, fc_b)


def to_pf(a_compact, B, H, W, c, cfg):
    """(B*H*W, c) -> padded-flat (cfg['m'], c) layout with true zero rings."""
    a = a_compact.reshape(B, H, W, c)
    a = jnp.pad(a, ((0, 0), (1, 1), (1, 1), (0, 0)))
    a = a.reshape(B * cfg['Hp'] * cfg['Wp'], c)
    return jnp.pad(a, ((0, cfg['m'] - cfg['m_valid']), (0, 0)))


def extract_compact(x_pf, cfg):
    """Padded-flat -> compact (B, H*W, c) valid-pixel view (rings dropped)."""
    B, H, W = cfg['B'], cfg['H'], cfg['W']
    c = x_pf.shape[1]
    xv = x_pf[:cfg['m_valid']].reshape(B, cfg['Hp'], cfg['Wp'], c)
    xv = xv[:, 1:H + 1, 1:W + 1, :]
    return xv.reshape(B, H * W, c)


def conv_bn_flat(x_pf, w, bn, cfg, relu=True, residual=None):
    conv, s, ss = flat_conv(x_pf, cfg['mask'], w, cfg)
    scale, shift = _scale_shift(s, ss, bn[0], bn[1], cfg['count'])
    return bn_apply(conv, scale, shift, residual=residual, relu=relu)


def basic_block_flat(x_pf, blk, cfg):
    a = conv_bn_flat(x_pf, blk['conv1_w'], blk['bn1'], cfg, relu=True)
    return conv_bn_flat(a, blk['conv2_w'], blk['bn2'], cfg, relu=True,
                        residual=x_pf)


def basic_block_last(x_pf, blk, cfg, fc_w, fc_b):
    a = conv_bn_flat(x_pf, blk['conv1_w'], blk['bn1'], cfg, relu=True)
    conv2, s, ss = flat_conv(a, cfg['mask'], blk['conv2_w'], cfg)
    scale, shift = _scale_shift(s, ss, *blk['bn2'], cfg['count'])
    return pool_fc(extract_compact(conv2, cfg), scale, shift,
                   extract_compact(x_pf, cfg), fc_w, fc_b)


def shortcut_block(x_pf, blk, cfg, *, last=False, fc_w=None, fc_b=None):
    """Downsample BasicBlock: fused (conv1 | 1x1 shortcut) matmul + dual BN, then
    a flat-path conv2 with residual add (or the fused pool+fc epilogue if last)."""
    B, H, W = cfg['B'], cfg['H'], cfg['W']
    cin = x_pf.shape[1]
    cout = blk['bn1'][0].shape[0]
    xv = x_pf[:cfg['m_valid']].reshape(B, cfg['Hp'], cfg['Wp'], cin)
    xv = xv[:, 1:H + 1, 1:W + 1, :]
    patches, Ho, Wo = im2col(xv, 3, 3, blk['stride'], 1)
    m_true = B * Ho * Wo
    cfg_out = stage_cfg(B, Ho, Wo)

    conv, s, ss = matmul_stats(patches, blk['fused_w'])
    scale1, shift1 = _scale_shift(s[:cout], ss[:cout], *blk['bn1'], m_true)
    scale2, shift2 = _scale_shift(s[cout:], ss[cout:], *blk['sc_bn'], m_true)
    a, sc = bn_dual(conv, scale1, shift1, scale2, shift2, cout)

    a_pf = to_pf(a[:m_true], B, Ho, Wo, cout, cfg_out)
    conv2, s, ss = flat_conv(a_pf, cfg_out['mask'], blk['conv2_w'], cfg_out)
    scale, shift = _scale_shift(s, ss, *blk['bn2'], cfg_out['count'])
    if not last:
        sc_pf = to_pf(sc[:m_true], B, Ho, Wo, cout, cfg_out)
        return bn_apply(conv2, scale, shift, residual=sc_pf, relu=True), cfg_out
    conv2_c = extract_compact(conv2, cfg_out)
    sc_c = sc[:m_true].reshape(B, Ho * Wo, cout)
    return pool_fc(conv2_c, scale, shift, sc_c, fc_w, fc_b), cfg_out


def forward(params, x_nchw):
    B, cin0, H, W = x_nchw.shape
    cfg = stage_cfg(B, H, W)
    # Stem input in padded-flat layout: NCHW -> NHWC, channels padded to 8, bf16.
    x = jnp.transpose(x_nchw, (0, 2, 3, 1)).astype(jnp.bfloat16)
    cpad = (-cin0) % 8 if cin0 % 8 else 0
    x = jnp.pad(x, ((0, 0), (1, 1), (1, 1), (0, cpad)))
    x = x.reshape(B * cfg['Hp'] * cfg['Wp'], cin0 + cpad)
    x = jnp.pad(x, ((0, cfg['m'] - cfg['m_valid']), (0, 0)))

    a = conv_bn_flat(x, params['conv1_w'], params['bn1'], cfg, relu=True)

    blocks = [blk for layer in params['layers'] for blk in layer]
    for bi, blk in enumerate(blocks):
        last = bi == len(blocks) - 1
        if 'fused_w' in blk:                               # downsample block
            out, cfg = shortcut_block(a, blk, cfg, last=last,
                                      fc_w=params['fc_w'], fc_b=params['fc_b'])
            if last:
                return out
            a = out
        else:                                              # stride-1 identity block
            if last:
                return basic_block_last(a, blk, cfg, params['fc_w'], params['fc_b'])
            a = basic_block_flat(a, blk, cfg)
    raise ValueError("model must contain at least one residual block")


# ---------------------------- parameter init --------------------------------

def _init_conv(key, cout, cin, kh, kw):
    return 0.1 * jax.random.normal(key, (cout, cin, kh, kw), jnp.float32)


def _init_bn(key, c):
    k1, k2 = jax.random.split(key)
    return (1.0 + 0.1 * jax.random.normal(k1, (c,), jnp.float32),
            0.1 * jax.random.normal(k2, (c,), jnp.float32))


def init_params_torch_layout(key, num_blocks=(1, 1, 1), num_classes=10):
    keys = iter(jax.random.split(key, 128))
    params = {
        'conv1_w': _init_conv(next(keys), 64, 3, 3, 3),
        'bn1': _init_bn(next(keys), 64),
    }
    in_c = 64
    layers = []
    for out_c, nb, stride in ((64, num_blocks[0], 1),
                              (128, num_blocks[1], 2),
                              (256, num_blocks[2], 2)):
        layer = []
        strides = [stride] + [1] * (nb - 1)
        for s in strides:
            blk = {
                'conv1_w': _init_conv(next(keys), out_c, in_c, 3, 3),
                'bn1': _init_bn(next(keys), out_c),
                'conv2_w': _init_conv(next(keys), out_c, out_c, 3, 3),
                'bn2': _init_bn(next(keys), out_c),
                'stride': s,
            }
            if s != 1 or in_c != out_c:
                blk['sc_w'] = _init_conv(next(keys), out_c, in_c, 1, 1)
                blk['sc_bn'] = _init_bn(next(keys), out_c)
            layer.append(blk)
            in_c = out_c
        layers.append(layer)
    params['layers'] = layers
    k1, k2 = jax.random.split(next(keys))
    params['fc_w'] = 0.1 * jax.random.normal(k1, (num_classes, 256), jnp.float32)
    params['fc_b'] = 0.1 * jax.random.normal(k2, (num_classes,), jnp.float32)
    return params


def prepare_params(p):
    """One-time layout hoist: (Cout,Cin,kh,kw) -> (kh*kw*Cin, Cout) bf16 matmul
    weights (tap-major), fused downsample+shortcut weights, bf16 fc weights."""
    def w_mat(w):                                   # -> (kh*kw*Cin, Cout) f32
        cout = w.shape[0]
        return jnp.transpose(w, (2, 3, 1, 0)).reshape(-1, cout)

    stem = p['conv1_w']
    cpad = (-stem.shape[1]) % 8 if stem.shape[1] % 8 else 0
    stem = jnp.pad(stem, ((0, 0), (0, cpad), (0, 0), (0, 0)))
    out = {
        'conv1_w': w_mat(stem).astype(jnp.bfloat16),
        'bn1': p['bn1'],
        'fc_w': p['fc_w'].T.astype(jnp.bfloat16),
        'fc_b': p['fc_b'].reshape(1, -1),
        'layers': [],
    }
    for layer in p['layers']:
        new_layer = []
        for blk in layer:
            nb = {
                'bn1': blk['bn1'], 'bn2': blk['bn2'], 'stride': blk['stride'],
                'conv2_w': w_mat(blk['conv2_w']).astype(jnp.bfloat16),
            }
            if 'sc_w' in blk:
                cout, cin = blk['conv1_w'].shape[0], blk['conv1_w'].shape[1]
                fused = jnp.zeros((9 * cin, 2 * cout), jnp.float32)
                fused = fused.at[:, :cout].set(w_mat(blk['conv1_w']))
                # 1x1 shortcut lives in the centre-tap rows of the fused weight.
                fused = fused.at[4 * cin:5 * cin, cout:].set(w_mat(blk['sc_w']))
                nb['fused_w'] = fused.astype(jnp.bfloat16)
                nb['sc_bn'] = blk['sc_bn']
            else:
                nb['conv1_w'] = w_mat(blk['conv1_w']).astype(jnp.bfloat16)
            new_layer.append(nb)
        out['layers'].append(new_layer)
    return out


if __name__ == "__main__":
    key = jax.random.PRNGKey(0)
    kp, kx = jax.random.split(key)
    torch_params = init_params_torch_layout(kp, num_blocks=(1, 1, 1), num_classes=10)
    params = prepare_params(torch_params)            # hoisted weight-layout transform
    x = jax.random.normal(kx, (2, 3, 16, 16), jnp.float32)
    logits = forward(params, x)
    jax.block_until_ready(logits)
    assert logits.shape == (2, 10) and logits.dtype == jnp.float32
    print("KERNEL_OK")
</pallas_src>

<mosaic_0001>
module attributes {stable_mosaic.version = 11 : i64} {
  func.func @_flat_conv_kernel(%arg0: i32, %arg1: memref<128x8xbf16, #tpu.memory_space<vmem>>, %arg2: memref<128x8xbf16, #tpu.memory_space<vmem>>, %arg3: memref<128x8xbf16, #tpu.memory_space<vmem>>, %arg4: memref<128x1xf32, #tpu.memory_space<vmem>>, %arg5: memref<128x1xf32, #tpu.memory_space<vmem>>, %arg6: memref<128x1xf32, #tpu.memory_space<vmem>>, %arg7: memref<72x64xbf16, #tpu.memory_space<vmem>>, %arg8: memref<128x64xbf16, #tpu.memory_space<vmem>>, %arg9: memref<1x1x64xf32, #tpu.memory_space<vmem>>, %arg10: memref<1x1x64xf32, #tpu.memory_space<vmem>>) attributes {dimension_semantics = [#tpu.dimension_semantics<parallel>], iteration_bounds = array<i64: 6>, scalar_prefetch = 0 : i64, scratch_operands = 0 : i64, tpu.core_type = #tpu.core_type<tc>, window_params = [{transform_indices = @transform_0, window_bounds = array<i64: 128, 8>}, {transform_indices = @transform_1, window_bounds = array<i64: 128, 8>}, {transform_indices = @transform_2, window_bounds = array<i64: 128, 8>}, {transform_indices = @transform_3, window_bounds = array<i64: 128, 1>}, {transform_indices = @transform_4, window_bounds = array<i64: 128, 1>}, {transform_indices = @transform_5, window_bounds = array<i64: 128, 1>}, {pipeline_mode = #tpu.pipeline_mode<synchronous>, transform_indices = @transform_6, window_bounds = array<i64: 72, 64>}, {transform_indices = @transform_7, window_bounds = array<i64: 128, 64>}, {transform_indices = @transform_8, window_bounds = array<i64: 1, 1, 64>}, {transform_indices = @transform_9, window_bounds = array<i64: 1, 1, 64>}]} {
    %c0 = arith.constant 0 : index
    %c0_0 = arith.constant 0 : index
    %0 = vector.load %arg1[%c0, %c0_0] : memref<128x8xbf16, #tpu.memory_space<vmem>>, vector<128x8xbf16>
    %c0_1 = arith.constant 0 : index
    %c0_2 = arith.constant 0 : index
    %1 = vector.load %arg2[%c0_1, %c0_2] : memref<128x8xbf16, #tpu.memory_space<vmem>>, vector<128x8xbf16>
    %c0_3 = arith.constant 0 : index
    %c0_4 = arith.constant 0 : index
    %2 = vector.load %arg3[%c0_3, %c0_4] : memref<128x8xbf16, #tpu.memory_space<vmem>>, vector<128x8xbf16>
    %3 = tpu.concatenate %0, %1, %2 in 0 : vector<128x8xbf16>, vector<128x8xbf16>, vector<128x8xbf16> -> vector<384x8xbf16>
    %c0_5 = arith.constant 0 : index
    %c0_6 = arith.constant 0 : index
    %4 = vector.load %arg4[%c0_5, %c0_6] : memref<128x1xf32, #tpu.memory_space<vmem>>, vector<128x1xf32>
    %c0_7 = arith.constant 0 : index
    %c0_8 = arith.constant 0 : index
    %5 = vector.load %arg5[%c0_7, %c0_8] : memref<128x1xf32, #tpu.memory_space<vmem>>, vector<128x1xf32>
    %c0_9 = arith.constant 0 : index
    %c0_10 = arith.constant 0 : index
    %6 = vector.load %arg6[%c0_9, %c0_10] : memref<128x1xf32, #tpu.memory_space<vmem>>, vector<128x1xf32>
    %7 = tpu.concatenate %4, %5, %6 in 0 : vector<128x1xf32>, vector<128x1xf32>, vector<128x1xf32> -> vector<384x1xf32>
    %cst = arith.constant 5.000000e-01 : f32
    %8 = vector.broadcast %cst : f32 to vector<384x1xf32>
    %9 = arith.cmpf ogt, %7, %8 : vector<384x1xf32>
    %cst_11 = arith.constant 0.000000e+00 : bf16
    %10 = vector.broadcast %cst_11 : bf16 to vector<384x8xbf16>
    %11 = vector.shape_cast %9 : vector<384x1xi1> to vector<384x1xi1>
    %12 = vector.broadcast %11 : vector<384x1xi1> to vector<384x8xi1>
    %13 = arith.select %12, %3, %10 : vector<384x8xi1>, vector<384x8xbf16>
    %cst_12 = arith.constant 0.000000e+00 : f32
    %14 = vector.broadcast %cst_12 : f32 to vector<128x64xf32>
    %15 = vector.extract_strided_slice %13 {offsets = [109, 0], sizes = [128, 8], strides = [1, 1]} : vector<384x8xbf16> to vector<128x8xbf16>
    %c0_13 = arith.constant 0 : index
    %c0_14 = arith.constant 0 : index
    %16 = vector.load %arg7[%c0_13, %c0_14] : memref<72x64xbf16, #tpu.memory_space<vmem>>, vector<8x64xbf16>
    %cst_15 = arith.constant dense<0.000000e+00> : vector<128x64xf32>
    %17 = tpu.matmul %15, %16, %cst_15 {dimension_numbers = #tpu.dot_dimension_numbers<[1], [0], [0], [1], [0, 0, 1, 1], [], []>} : vector<128x8xbf16>, vector<8x64xbf16>, vector<128x64xf32> -> vector<128x64xf32>
    %18 = arith.addf %14, %17 : vector<128x64xf32>
    %19 = vector.extract_strided_slice %13 {offsets = [110, 0], sizes = [128, 8], strides = [1, 1]} : vector<384x8xbf16> to vector<128x8xbf16>
    %c8 = arith.constant 8 : index
    %c0_16 = arith.constant 0 : index
    %20 = vector.load %arg7[%c8, %c0_16] : memref<72x64xbf16, #tpu.memory_space<vmem>>, vector<8x64xbf16>
    %cst_17 = arith.constant dense<0.000000e+00> : vector<128x64xf32>
    %21 = tpu.matmul %19, %20, %cst_17 {dimension_numbers = #tpu.dot_dimension_numbers<[1], [0], [0], [1], [0, 0, 1, 1], [], []>} : vector<128x8xbf16>, vector<8x64xbf16>, vector<128x64xf32> -> vector<128x64xf32>
    %22 = arith.addf %18, %21 : vector<128x64xf32>
    %23 = vector.extract_strided_slice %13 {offsets = [111, 0], sizes = [128, 8], strides = [1, 1]} : vector<384x8xbf16> to vector<128x8xbf16>
    %c16 = arith.constant 16 : index
    %c0_18 = arith.constant 0 : index
    %24 = vector.load %arg7[%c16, %c0_18] : memref<72x64xbf16, #tpu.memory_space<vmem>>, vector<8x64xbf16>
    %cst_19 = arith.constant dense<0.000000e+00> : vector<128x64xf32>
    %25 = tpu.matmul %23, %24, %cst_19 {dimension_numbers = #tpu.dot_dimension_numbers<[1], [0], [0], [1], [0, 0, 1, 1], [], []>} : vector<128x8xbf16>, vector<8x64xbf16>, vector<128x64xf32> -> vector<128x64xf32>
    %26 = arith.addf %22, %25 : vector<128x64xf32>
    %27 = vector.extract_strided_slice %13 {offsets = [127, 0], sizes = [128, 8], strides = [1, 1]} : vector<384x8xbf16> to vector<128x8xbf16>
    %c24 = arith.constant 24 : index
    %c0_20 = arith.constant 0 : index
    %28 = vector.load %arg7[%c24, %c0_20] : memref<72x64xbf16, #tpu.memory_space<vmem>>, vector<8x64xbf16>
    %cst_21 = arith.constant dense<0.000000e+00> : vector<128x64xf32>
    %29 = tpu.matmul %27, %28, %cst_21 {dimension_numbers = #tpu.dot_dimension_numbers<[1], [0], [0], [1], [0, 0, 1, 1], [], []>} : vector<128x8xbf16>, vector<8x64xbf16>, vector<128x64xf32> -> vector<128x64xf32>
    %30 = arith.addf %26, %29 : vector<128x64xf32>
    %31 = vector.extract_strided_slice %13 {offsets = [128, 0], sizes = [128, 8], strides = [1, 1]} : vector<384x8xbf16> to vector<128x8xbf16>
    %c32 = arith.constant 32 : index
    %c0_22 = arith.constant 0 : index
    %32 = vector.load %arg7[%c32, %c0_22] : memref<72x64xbf16, #tpu.memory_space<vmem>>, vector<8x64xbf16>
    %cst_23 = arith.constant dense<0.000000e+00> : vector<128x64xf32>
    %33 = tpu.matmul %31, %32, %cst_23 {dimension_numbers = #tpu.dot_dimension_numbers<[1], [0], [0], [1], [0, 0, 1, 1], [], []>} : vector<128x8xbf16>, vector<8x64xbf16>, vector<128x64xf32> -> vector<128x64xf32>
    %34 = arith.addf %30, %33 : vector<128x64xf32>
    %35 = vector.extract_strided_slice %13 {offsets = [129, 0], sizes = [128, 8], strides = [1, 1]} : vector<384x8xbf16> to vector<128x8xbf16>
    %c40 = arith.constant 40 : index
    %c0_24 = arith.constant 0 : index
    %36 = vector.load %arg7[%c40, %c0_24] : memref<72x64xbf16, #tpu.memory_space<vmem>>, vector<8x64xbf16>
    %cst_25 = arith.constant dense<0.000000e+00> : vector<128x64xf32>
    %37 = tpu.matmul %35, %36, %cst_25 {dimension_numbers = #tpu.dot_dimension_numbers<[1], [0], [0], [1], [0, 0, 1, 1], [], []>} : vector<128x8xbf16>, vector<8x64xbf16>, vector<128x64xf32> -> vector<128x64xf32>
    %38 = arith.addf %34, %37 : vector<128x64xf32>
    %39 = vector.extract_strided_slice %13 {offsets = [145, 0], sizes = [128, 8], strides = [1, 1]} : vector<384x8xbf16> to vector<128x8xbf16>
    %c48 = arith.constant 48 : index
    %c0_26 = arith.constant 0 : index
    %40 = vector.load %arg7[%c48, %c0_26] : memref<72x64xbf16, #tpu.memory_space<vmem>>, vector<8x64xbf16>
    %cst_27 = arith.constant dense<0.000000e+00> : vector<128x64xf32>
    %41 = tpu.matmul %39, %40, %cst_27 {dimension_numbers = #tpu.dot_dimension_numbers<[1], [0], [0], [1], [0, 0, 1, 1], [], []>} : vector<128x8xbf16>, vector<8x64xbf16>, vector<128x64xf32> -> vector<128x64xf32>
    %42 = arith.addf %38, %41 : vector<128x64xf32>
    %43 = vector.extract_strided_slice %13 {offsets = [146, 0], sizes = [128, 8], strides = [1, 1]} : vector<384x8xbf16> to vector<128x8xbf16>
    %c56 = arith.constant 56 : index
    %c0_28 = arith.constant 0 : index
    %44 = vector.load %arg7[%c56, %c0_28] : memref<72x64xbf16, #tpu.memory_space<vmem>>, vector<8x64xbf16>
    %cst_29 = arith.constant dense<0.000000e+00> : vector<128x64xf32>
    %45 = tpu.matmul %43, %44, %cst_29 {dimension_numbers = #tpu.dot_dimension_numbers<[1], [0], [0], [1], [0, 0, 1, 1], [], []>} : vector<128x8xbf16>, vector<8x64xbf16>, vector<128x64xf32> -> vector<128x64xf32>
    %46 = arith.addf %42, %45 : vector<128x64xf32>
    %47 = vector.extract_strided_slice %13 {offsets = [147, 0], sizes = [128, 8], strides = [1, 1]} : vector<384x8xbf16> to vector<128x8xbf16>
    %c64 = arith.constant 64 : index
    %c0_30 = arith.constant 0 : index
    %48 = vector.load %arg7[%c64, %c0_30] : memref<72x64xbf16, #tpu.memory_space<vmem>>, vector<8x64xbf16>
    %cst_31 = arith.constant dense<0.000000e+00> : vector<128x64xf32>
    %49 = tpu.matmul %47, %48, %cst_31 {dimension_numbers = #tpu.dot_dimension_numbers<[1], [0], [0], [1], [0, 0, 1, 1], [], []>} : vector<128x8xbf16>, vector<8x64xbf16>, vector<128x64xf32> -> vector<128x64xf32>
    %50 = arith.addf %46, %49 : vector<128x64xf32>
    %51 = arith.truncf %50 : vector<128x64xf32> to vector<128x64xbf16>
    %c0_32 = arith.constant 0 : index
    %c0_33 = arith.constant 0 : index
    %52 = vector.load %arg8[%c0_32, %c0_33] : memref<128x64xbf16, #tpu.memory_space<vmem>>, vector<128x64xbf16>
    tpu.vector_store %arg8[%c0_32, %c0_33], %51 {strides = array<i32>} : memref<128x64xbf16, #tpu.memory_space<vmem>>, vector<128x64xbf16>,
    %c0_34 = arith.constant 0 : index
    %c0_35 = arith.constant 0 : index
    %53 = vector.load %arg5[%c0_34, %c0_35] : memref<128x1xf32, #tpu.memory_space<vmem>>, vector<128x1xf32>
    %cst_36 = arith.constant 5.000000e-01 : f32
    %54 = vector.broadcast %cst_36 : f32 to vector<128x1xf32>
    %55 = arith.cmpf ogt, %53, %54 : vector<128x1xf32>
    %cst_37 = arith.constant 0.000000e+00 : f32
    %56 = vector.shape_cast %55 : vector<128x1xi1> to vector<128x1xi1>
    %57 = vector.broadcast %56 : vector<128x1xi1> to vector<128x64xi1>
    %58 = vector.broadcast %cst_37 : f32 to vector<128x64xf32>
    %59 = arith.select %57, %50, %58 : vector<128x64xi1>, vector<128x64xf32>
    %cst_38 = arith.constant dense<0.000000e+00> : vector<64xf32>
    %60 = vector.multi_reduction <add>, %59, %cst_38 [0] : vector<128x64xf32> to vector<64xf32>
    %61 = vector.shape_cast %60 : vector<64xf32> to vector<1x64xf32>
    %62 = vector.shape_cast %61 : vector<1x64xf32> to vector<1x1x64xf32>
    %c0_39 = arith.constant 0 : index
    %c0_40 = arith.constant 0 : index
    %c0_41 = arith.constant 0 : index
    %63 = vector.load %arg9[%c0_39, %c0_40, %c0_41] : memref<1x1x64xf32, #tpu.memory_space<vmem>>, vector<1x1x64xf32>
    tpu.vector_store %arg9[%c0_39, %c0_40, %c0_41], %62 {strides = array<i32>} : memref<1x1x64xf32, #tpu.memory_space<vmem>>, vector<1x1x64xf32>,
    %64 = arith.mulf %59, %59 : vector<128x64xf32>
    %cst_42 = arith.constant dense<0.000000e+00> : vector<64xf32>
    %65 = vector.multi_reduction <add>, %64, %cst_42 [0] : vector<128x64xf32> to vector<64xf32>
    %66 = vector.shape_cast %65 : vector<64xf32> to vector<1x64xf32>
    %67 = vector.shape_cast %66 : vector<1x64xf32> to vector<1x1x64xf32>
    %c0_43 = arith.constant 0 : index
    %c0_44 = arith.constant 0 : index
    %c0_45 = arith.constant 0 : index
    %68 = vector.load %arg10[%c0_43, %c0_44, %c0_45] : memref<1x1x64xf32, #tpu.memory_space<vmem>>, vector<1x1x64xf32>
    tpu.vector_store %arg10[%c0_43, %c0_44, %c0_45], %67 {strides = array<i32>} : memref<1x1x64xf32, #tpu.memory_space<vmem>>, vector<1x1x64xf32>,
    return
  }
  func.func @transform_0(%arg0: i32) -> (i32, i32) {
    %c1_i32 = arith.constant 1 : i32
    %0 = arith.subi %arg0, %c1_i32 : i32
    %c0_i32 = arith.constant 0 : i32
    %1 = arith.maxsi %0, %c0_i32 : i32
    %c0_i32_0 = arith.constant 0 : i32
    %c0_i32_1 = arith.constant 0 : i32
    return %1, %c0_i32_0 : i32, i32
  }
  func.func @transform_1(%arg0: i32) -> (i32, i32) {
    %c0_i32 = arith.constant 0 : i32
    %c0_i32_0 = arith.constant 0 : i32
    return %arg0, %c0_i32 : i32, i32
  }
  func.func @transform_2(%arg0: i32) -> (i32, i32) {
    %c1_i32 = arith.constant 1 : i32
    %0 = arith.addi %arg0, %c1_i32 : i32
    %c5_i32 = arith.constant 5 : i32
    %1 = arith.minsi %0, %c5_i32 : i32
    %c0_i32 = arith.constant 0 : i32
    %c0_i32_0 = arith.constant 0 : i32
    return %1, %c0_i32 : i32, i32
  }
  func.func @transform_3(%arg0: i32) -> (i32, i32) {
    %c1_i32 = arith.constant 1 : i32
    %0 = arith.subi %arg0, %c1_i32 : i32
    %c0_i32 = arith.constant 0 : i32
    %1 = arith.maxsi %0, %c0_i32 : i32
    %c0_i32_0 = arith.constant 0 : i32
    %c0_i32_1 = arith.constant 0 : i32
    return %1, %c0_i32_0 : i32, i32
  }
  func.func @transform_4(%arg0: i32) -> (i32, i32) {
    %c0_i32 = arith.constant 0 : i32
    %c0_i32_0 = arith.constant 0 : i32
    return %arg0, %c0_i32 : i32, i32
  }
  func.func @transform_5(%arg0: i32) -> (i32, i32) {
    %c1_i32 = arith.constant 1 : i32
    %0 = arith.addi %arg0, %c1_i32 : i32
    %c5_i32 = arith.constant 5 : i32
    %1 = arith.minsi %0, %c5_i32 : i32
    %c0_i32 = arith.constant 0 : i32
    %c0_i32_0 = arith.constant 0 : i32
    return %1, %c0_i32 : i32, i32
  }
  func.func @transform_6(%arg0: i32) -> (i32, i32) {
    %c0_i32 = arith.constant 0 : i32
    %c0_i32_0 = arith.constant 0 : i32
    %c0_i32_1 = arith.constant 0 : i32
    return %c0_i32, %c0_i32_0 : i32, i32
  }
  func.func @transform_7(%arg0: i32) -> (i32, i32) {
    %c0_i32 = arith.constant 0 : i32
    %c0_i32_0 = arith.constant 0 : i32
    return %arg0, %c0_i32 : i32, i32
  }
  func.func @transform_8(%arg0: i32) -> (i32, i32, i32) {
    %c0_i32 = arith.constant 0 : i32
    %c0_i32_0 = arith.constant 0 : i32
    %c0_i32_1 = arith.constant 0 : i32
    return %arg0, %c0_i32, %c0_i32_0 : i32, i32, i32
  }
  func.func @transform_9(%arg0: i32) -> (i32, i32, i32) {
    %c0_i32 = arith.constant 0 : i32
    %c0_i32_0 = arith.constant 0 : i32
    %c0_i32_1 = arith.constant 0 : i32
    return %arg0, %c0_i32, %c0_i32_0 : i32, i32, i32
  }
}

</mosaic_0001>

<llo_original>
// kernel: tpu_custom_call.1
$region0: #{tpu_custom_call.1}
  #allocation0 [shape = 'u32[]', space=smem, size = 0x4, offset = 0x4, fixed_abs, tag = 'smem constant byte address 0x4 - core index']
  #allocation1 [shape = 'u32[144,128]{1,0:T(1,128)}', space=vmem, size = 0x12000, scoped, tag = 'internal scratch']
  %s0 = inlined_call_operand.vmem [shape: bf16[768,8], index: 0, kind: input, shape index: {}]
  %s1 = inlined_call_operand.vmem [shape: bf16[768,8], index: 1, kind: input, shape index: {}]
  %s2 = inlined_call_operand.vmem [shape: bf16[768,8], index: 2, kind: input, shape index: {}]
  %s3 = inlined_call_operand.vmem [shape: f32[768,1], index: 3, kind: input, shape index: {}]
  %s4 = inlined_call_operand.vmem [shape: f32[768,1], index: 4, kind: input, shape index: {}]
  %s5 = inlined_call_operand.vmem [shape: f32[768,1], index: 5, kind: input, shape index: {}]
  %s6 = inlined_call_operand.vmem [shape: bf16[72,64], index: 6, kind: input, shape index: {}]
  %s7 = inlined_call_operand.vmem [shape: bf16[768,64], index: 7, kind: output, shape index: {0}]
  %s8 = inlined_call_operand.hbm [shape: f32[6,1,64], index: 8, kind: output, shape index: {1}]
  %s9 = inlined_call_operand.hbm [shape: f32[6,1,64], index: 9, kind: output, shape index: {2}]
  %10 = xla_tuple %s7, %s8, %s9
  %s11 = sld [smem:[#allocation0]]
  $region77: #{tpu_custom_call.1} parent=0
    _
  %s13 = ssub.s32 1, %s11
  %s14 = scalar_select 0, %s13, %s11
  $region1: #{tpu_custom_call.1} parent=0
    #allocation2 [shape = 'u8[1024]{0}', space=vmem, size = 0x400, scoped, tag = 'output window, operand 1']
    #allocation3 [shape = 's32[2]{0}', space=sflag, size = 0x8, scoped, tag = 'scoped memory for tpu_custom_call.1']
    #allocation4 [shape = 'u8[1024]{0}', space=vmem, size = 0x400, scoped, tag = 'output window, operand 2']
    #allocation5 [shape = 's32[2]{0}', space=sflag, size = 0x8, scoped, tag = 'scoped memory for tpu_custom_call.1']
    %15 = vsyncpa [#allocation3], 0
    %s16 = scalar_lea.sflag [#allocation3], 1
    %17 = vsyncpa %s16, 0
    %18 = vsyncpa [#allocation5], 0
    %s19 = scalar_lea.sflag [#allocation5], 1
    %20 = vsyncpa %s19, 0
    loop: start=0, step=1, limit=8
    $region2: #{tpu_custom_call.1} parent=1 // loop_pre_header
      _
    $region3: #{tpu_custom_call.1} parent=1 // loop_header
      %s22 = sphi 0, %s26
      %p23 = scmp.ge.s32.totalorder %s22, 8
      %s38 = sphi 0, %s40
      %s41 = sphi 0, %s38
      %s42 = sphi 0, %s41
      %s58 = sphi 0, %s42
      %s64 = sphi 0, %s66
      %s67 = sphi 0, %s64
      %s68 = sphi 0, %s67
      %s84 = sphi 0, %s68
      %s96 = sphi 0, %s98
      %s99 = sphi 0, %s96
      %s100 = sphi 0, %s99
      %s116 = sphi 0, %s100
      %s128 = sphi 0, %s130
      %s131 = sphi 0, %s128
      %s132 = sphi 0, %s131
      %s148 = sphi 0, %s132
      %s154 = sphi 0, %s156
      %s157 = sphi 0, %s154
      %s158 = sphi 0, %s157
      %s174 = sphi 0, %s158
      %s186 = sphi 0, %s188
      %s189 = sphi 0, %s186
      %s190 = sphi 0, %s189
      %s206 = sphi 0, %s190
      %s210 = sphi 0, %s210
      %s212 = sphi 0, %s210
      %s213 = sphi 0, %s212
      %s227 = sphi 0, %s213
      %s233 = sphi 0, %s235
      %s236 = sphi 0, %s233
      %s237 = sphi 0, %s236
      %s253 = sphi 0, %s237
      %s259 = sphi 0, %s261
      %s262 = sphi 0, %s259
      %s263 = sphi 0, %s262
      %s279 = sphi 0, %s263
      %s285 = sphi 0, %s287
      %s288 = sphi 0, %s285
      %s289 = sphi 0, %s288
      %s305 = sphi 0, %s289
    $region4: #{tpu_custom_call.1} parent=1 // loop_header_branch
      %25 = sbr.rel (%p23) target = $region8
    $region5: #{tpu_custom_call.1} parent=1 // loop_body
      %s27 = ssub.s32 %s22, 1
      %s28 = ssub.s32 %s22, 2
      %s29 = sadd.s32 %s22, 1
      %s30 = ssub.s32 %s22, 1
      %p31 = scmp.gt.s32.totalorder %s30, 0
      %s32 = scalar_select %p31, %s30, 0
      %s33 = ssub.s32 %s29, 1
      %p34 = scmp.gt.s32.totalorder %s33, 0
      %s35 = scalar_select %p34, %s33, 0
      %s36 = ssub.s32 %s32, %s35
      %p37 = scmp.eq.s32.totalorder %s36, 0
      %s39 = sadd.s32 %s38, 1
      %s40 = scalar_select %p37, %s38, %s39
      %p43 = pneg %p37
      %p44 = scmp.eq.s32.totalorder %s22, 5
      %p45 = por %p43, %p44
      %p46 = scmp.ne.s32.totalorder %s38, %s41
      %p47 = scmp.eq.s32.totalorder %s22, 0
      %p48 = por %p46, %p47
      %p49 = scmp.ne.s32.totalorder %s38, %s41
      %p50 = scmp.eq.s32.totalorder %s27, 5
      %p51 = por %p49, %p50
      %p52 = scmp.ne.s32.totalorder %s41, %s42
      %p53 = scmp.eq.s32.totalorder %s27, 0
      %p54 = por %p52, %p53
      %p55 = scmp.ne.s32.totalorder %s41, %s42
      %p56 = scmp.eq.s32.totalorder %s28, 5
      %p57 = por %p55, %p56
      %p59 = scmp.ne.s32.totalorder %s42, %s58
      %p60 = scmp.eq.s32.totalorder %s28, 0
      %p61 = por %p59, %p60
      %s62 = ssub.s32 %s22, %s29
      %p63 = scmp.eq.s32.totalorder %s62, 0
      %s65 = sadd.s32 %s64, 1
      %s66 = scalar_select %p63, %s64, %s65
      %p69 = pneg %p63
      %p70 = scmp.eq.s32.totalorder %s22, 5
      %p71 = por %p69, %p70
      %p72 = scmp.ne.s32.totalorder %s64, %s67
      %p73 = scmp.eq.s32.totalorder %s22, 0
      %p74 = por %p72, %p73
      %p75 = scmp.ne.s32.totalorder %s64, %s67
      %p76 = scmp.eq.s32.totalorder %s27, 5
      %p77 = por %p75, %p76
      %p78 = scmp.ne.s32.totalorder %s67, %s68
      %p79 = scmp.eq.s32.totalorder %s27, 0
      %p80 = por %p78, %p79
      %p81 = scmp.ne.s32.totalorder %s67, %s68
      %p82 = scmp.eq.s32.totalorder %s28, 5
      %p83 = por %p81, %p82
      %p85 = scmp.ne.s32.totalorder %s68, %s84
      %p86 = scmp.eq.s32.totalorder %s28, 0
      %p87 = por %p85, %p86
      %s88 = sadd.s32 %s22, 1
      %p89 = scmp.lt.s32.totalorder %s88, 5
      %s90 = scalar_select %p89, %s88, 5
      %s91 = sadd.s32 %s29, 1
      %p92 = scmp.lt.s32.totalorder %s91, 5
      %s93 = scalar_select %p92, %s91, 5
      %s94 = ssub.s32 %s90, %s93
      %p95 = scmp.eq.s32.totalorder %s94, 0
      %s97 = sadd.s32 %s96, 1
      %s98 = scalar_select %p95, %s96, %s97
      %p101 = pneg %p95
      %p102 = scmp.eq.s32.totalorder %s22, 5
      %p103 = por %p101, %p102
      %p104 = scmp.ne.s32.totalorder %s96, %s99
      %p105 = scmp.eq.s32.totalorder %s22, 0
      %p106 = por %p104, %p105
      %p107 = scmp.ne.s32.totalorder %s96, %s99
      %p108 = scmp.eq.s32.totalorder %s27, 5
      %p109 = por %p107, %p108
      %p110 = scmp.ne.s32.totalorder %s99, %s100
      %p111 = scmp.eq.s32.totalorder %s27, 0
      %p112 = por %p110, %p111
      %p113 = scmp.ne.s32.totalorder %s99, %s100
      %p114 = scmp.eq.s32.totalorder %s28, 5
      %p115 = por %p113, %p114
      %p117 = scmp.ne.s32.totalorder %s100, %s116
      %p118 = scmp.eq.s32.totalorder %s28, 0
      %p119 = por %p117, %p118
      %s120 = ssub.s32 %s22, 1
      %p121 = scmp.gt.s32.totalorder %s120, 0
      %s122 = scalar_select %p121, %s120, 0
      %s123 = ssub.s32 %s29, 1
      %p124 = scmp.gt.s32.totalorder %s123, 0
      %s125 = scalar_select %p124, %s123, 0
      %s126 = ssub.s32 %s122, %s125
      %p127 = scmp.eq.s32.totalorder %s126, 0
      %s129 = sadd.s32 %s128, 1
      %s130 = scalar_select %p127, %s128, %s129
      %p133 = pneg %p127
      %p134 = scmp.eq.s32.totalorder %s22, 5
      %p135 = por %p133, %p134
      %p136 = scmp.ne.s32.totalorder %s128, %s131
      %p137 = scmp.eq.s32.totalorder %s22, 0
      %p138 = por %p136, %p137
      %p139 = scmp.ne.s32.totalorder %s128, %s131
      %p140 = scmp.eq.s32.totalorder %s27, 5
      %p141 = por %p139, %p140
      %p142 = scmp.ne.s32.totalorder %s131, %s132
      %p143 = scmp.eq.s32.totalorder %s27, 0
      %p144 = por %p142, %p143
      %p145 = scmp.ne.s32.totalorder %s131, %s132
      %p146 = scmp.eq.s32.totalorder %s28, 5
      %p147 = por %p145, %p146
      %p149 = scmp.ne.s32.totalorder %s132, %s148
      %p150 = scmp.eq.s32.totalorder %s28, 0
      %p151 = por %p149, %p150
      %s152 = ssub.s32 %s22, %s29
      %p153 = scmp.eq.s32.totalorder %s152, 0
      %s155 = sadd.s32 %s154, 1
      %s156 = scalar_select %p153, %s154, %s155
      %p159 = pneg %p153
      %p160 = scmp.eq.s32.totalorder %s22, 5
      %p161 = por %p159, %p160
      %p162 = scmp.ne.s32.totalorder %s154, %s157
      %p163 = scmp.eq.s32.totalorder %s22, 0
      %p164 = por %p162, %p163
      %p165 = scmp.ne.s32.totalorder %s154, %s157
      %p166 = scmp.eq.s32.totalorder %s27, 5
      %p167 = por %p165, %p166
      %p168 = scmp.ne.s32.totalorder %s157, %s158
      %p169 = scmp.eq.s32.totalorder %s27, 0
      %p170 = por %p168, %p169
      %p171 = scmp.ne.s32.totalorder %s157, %s158
      %p172 = scmp.eq.s32.totalorder %s28, 5
      %p173 = por %p171, %p172
      %p175 = scmp.ne.s32.totalorder %s158, %s174
      %p176 = scmp.eq.s32.totalorder %s28, 0
      %p177 = por %p175, %p176
      %s178 = sadd.s32 %s22, 1
      %p179 = scmp.lt.s32.totalorder %s178, 5
      %s180 = scalar_select %p179, %s178, 5
      %s181 = sadd.s32 %s29, 1
      %p182 = scmp.lt.s32.totalorder %s181, 5
      %s183 = scalar_select %p182, %s181, 5
      %s184 = ssub.s32 %s180, %s183
      %p185 = scmp.eq.s32.totalorder %s184, 0
      %s187 = sadd.s32 %s186, 1
      %s188 = scalar_select %p185, %s186, %s187
      %p191 = pneg %p185
      %p192 = scmp.eq.s32.totalorder %s22, 5
      %p193 = por %p191, %p192
      %p194 = scmp.ne.s32.totalorder %s186, %s189
      %p195 = scmp.eq.s32.totalorder %s22, 0
      %p196 = por %p194, %p195
      %p197 = scmp.ne.s32.totalorder %s186, %s189
      %p198 = scmp.eq.s32.totalorder %s27, 5
      %p199 = por %p197, %p198
      %p200 = scmp.ne.s32.totalorder %s189, %s190
      %p201 = scmp.eq.s32.totalorder %s27, 0
      %p202 = por %p200, %p201
      %p203 = scmp.ne.s32.totalorder %s189, %s190
      %p204 = scmp.eq.s32.totalorder %s28, 5
      %p205 = por %p203, %p204
      %p207 = scmp.ne.s32.totalorder %s190, %s206
      %p208 = scmp.eq.s32.totalorder %s28, 0
      %p209 = por %p207, %p208
      %s211 = sadd.s32 %s210, 1
      %p214 = scmp.eq.s32.totalorder %s22, 5
      %p215 = scmp.ne.s32.totalorder %s210, %s212
      %p216 = scmp.eq.s32.totalorder %s22, 0
      %p217 = por %p215, %p216
      %p218 = scmp.ne.s32.totalorder %s210, %s212
      %p219 = scmp.eq.s32.totalorder %s27, 5
      %p220 = por %p218, %p219
      %p221 = scmp.ne.s32.totalorder %s212, %s213
      %p222 = scmp.eq.s32.totalorder %s27, 0
      %p223 = por %p221, %p222
      %p224 = scmp.ne.s32.totalorder %s212, %s213
      %p225 = scmp.eq.s32.totalorder %s28, 5
      %p226 = por %p224, %p225
      %p228 = scmp.ne.s32.totalorder %s213, %s227
      %p229 = scmp.eq.s32.totalorder %s28, 0
      %p230 = por %p228, %p229
      %s231 = ssub.s32 %s22, %s29
      %p232 = scmp.eq.s32.totalorder %s231, 0
      %s234 = sadd.s32 %s233, 1
      %s235 = scalar_select %p232, %s233, %s234
      %p238 = pneg %p232
      %p239 = scmp.eq.s32.totalorder %s22, 5
      %p240 = por %p238, %p239
      %p241 = scmp.ne.s32.totalorder %s233, %s236
      %p242 = scmp.eq.s32.totalorder %s22, 0
      %p243 = por %p241, %p242
      %p244 = scmp.ne.s32.totalorder %s233, %s236
      %p245 = scmp.eq.s32.totalorder %s27, 5
      %p246 = por %p244, %p245
      %p247 = scmp.ne.s32.totalorder %s236, %s237
      %p248 = scmp.eq.s32.totalorder %s27, 0
      %p249 = por %p247, %p248
      %p250 = scmp.ne.s32.totalorder %s236, %s237
      %p251 = scmp.eq.s32.totalorder %s28, 5
      %p252 = por %p250, %p251
      %p254 = scmp.ne.s32.totalorder %s237, %s253
      %p255 = scmp.eq.s32.totalorder %s28, 0
      %p256 = por %p254, %p255
      %s257 = ssub.s32 %s22, %s29
      %p258 = scmp.eq.s32.totalorder %s257, 0
      %s260 = sadd.s32 %s259, 1
      %s261 = scalar_select %p258, %s259, %s260
      %p264 = pneg %p258
      %p265 = scmp.eq.s32.totalorder %s22, 5
      %p266 = por %p264, %p265
      %p267 = scmp.ne.s32.totalorder %s259, %s262
      %p268 = scmp.eq.s32.totalorder %s22, 0
      %p269 = por %p267, %p268
      %p270 = scmp.ne.s32.totalorder %s259, %s262
      %p271 = scmp.eq.s32.totalorder %s27, 5
      %p272 = por %p270, %p271
      %p273 = scmp.ne.s32.totalorder %s262, %s263
      %p274 = scmp.eq.s32.totalorder %s27, 0
      %p275 = por %p273, %p274
      %p276 = scmp.ne.s32.totalorder %s262, %s263
      %p277 = scmp.eq.s32.totalorder %s28, 5
      %p278 = por %p276, %p277
      %p280 = scmp.ne.s32.totalorder %s263, %s279
      %p281 = scmp.eq.s32.totalorder %s28, 0
      %p282 = por %p280, %p281
      %s283 = ssub.s32 %s22, %s29
      %p284 = scmp.eq.s32.totalorder %s283, 0
      %s286 = sadd.s32 %s285, 1
      %s287 = scalar_select %p284, %s285, %s286
      %p290 = pneg %p284
      %p291 = scmp.eq.s32.totalorder %s22, 5
      %p292 = por %p290, %p291
      %p293 = scmp.ne.s32.totalorder %s285, %s288
      %p294 = scmp.eq.s32.totalorder %s22, 0
      %p295 = por %p293, %p294
      %p296 = scmp.ne.s32.totalorder %s285, %s288
      %p297 = scmp.eq.s32.totalorder %s27, 5
      %p298 = por %p296, %p297
      %p299 = scmp.ne.s32.totalorder %s288, %s289
      %p300 = scmp.eq.s32.totalorder %s27, 0
      %p301 = por %p299, %p300
      %p302 = scmp.ne.s32.totalorder %s288, %s289
      %p303 = scmp.eq.s32.totalorder %s28, 5
      %p304 = por %p302, %p303
      %p306 = scmp.ne.s32.totalorder %s289, %s305
      %p307 = scmp.eq.s32.totalorder %s28, 0
      %p308 = por %p306, %p307
      %p309 = scmp.le.s32.totalorder 1, %s22
      %p310 = scmp.lt.s32.totalorder %s22, 7
      %p311 = pnand %p309, %p310
      %p312 = pneg %p311
      // Predicated region
      $region9: #{tpu_custom_call.1} parent=5 // pred_check
        _
      $region10: #{tpu_custom_call.1} parent=5 // pred_check_branch
        %314 = sbr.rel (%p311) target = $region12
      $region11: #{tpu_custom_call.1} parent=5 // pred_region
        %s315 = ssub.s32 %s22, 1
        // Predicated region
        $region13: #{tpu_custom_call.1} parent=11 // pred_check
          %p316 = pneg %p223
        $region14: #{tpu_custom_call.1} parent=11 // pred_check_branch
          %318 = sbr.rel (%p316) target = $region16
        $region15: #{tpu_custom_call.1} parent=11 // pred_region
          _
        $region16: #{tpu_custom_call.1} parent=11 // pred_fallthru
          _
      $region12: #{tpu_custom_call.1} parent=5 // pred_fallthru
        _
      %p319 = scmp.lt.s32.totalorder %s22, 6
      // Predicated region
      $region17: #{tpu_custom_call.1} parent=5 // pred_check
        %p320 = pneg %p319
      $region18: #{tpu_custom_call.1} parent=5 // pred_check_branch
        %322 = sbr.rel (%p320) target = $region20
      $region19: #{tpu_custom_call.1} parent=5 // pred_region
        // Predicated region
        $region21: #{tpu_custom_call.1} parent=19 // pred_check
          %p323 = pneg %p48
        $region22: #{tpu_custom_call.1} parent=19 // pred_check_branch
          %325 = sbr.rel (%p323) target = $region24
        $region23: #{tpu_custom_call.1} parent=19 // pred_region
          %s326 = ssub.s32 %s22, 1
          %p327 = scmp.gt.s32.totalorder %s326, 0
          %s328 = scalar_select %p327, %s326, 0
          %s329 = smul.u32 16, %s328
          %p330 = scmp.lt.s32.totalorder %s329, 95
          %s331 = scalar_select %p330, %s329, 95
          %s332 = smul.addr %s331, 4
          %s333 = scalar_lea.vmem %s0, %s332
          %s334 = ssub.s32 %s22, 1
          %p335 = scmp.gt.s32.totalorder %s334, 0
          %s336 = scalar_select %p335, %s334, 0
          %s337 = smul.u32 16, %s336
        $region24: #{tpu_custom_call.1} parent=19 // pred_fallthru
          _
        // Predicated region
        $region25: #{tpu_custom_call.1} parent=19 // pred_check
          %p338 = pneg %p74
        $region26: #{tpu_custom_call.1} parent=19 // pred_check_branch
          %340 = sbr.rel (%p338) target = $region28
        $region27: #{tpu_custom_call.1} parent=19 // pred_region
          %s341 = smul.u32 16, %s22
          %p342 = scmp.lt.s32.totalorder %s341, 95
          %s343 = scalar_select %p342, %s341, 95
          %s344 = smul.addr %s343, 4
          %s345 = scalar_lea.vmem %s1, %s344
          %s346 = smul.u32 16, %s22
        $region28: #{tpu_custom_call.1} parent=19 // pred_fallthru
          _
        // Predicated region
        $region29: #{tpu_custom_call.1} parent=19 // pred_check
          %p347 = pneg %p106
        $region30: #{tpu_custom_call.1} parent=19 // pred_check_branch
          %349 = sbr.rel (%p347) target = $region32
        $region31: #{tpu_custom_call.1} parent=19 // pred_region
          %s350 = sadd.s32 %s22, 1
          %p351 = scmp.lt.s32.totalorder %s350, 5
          %s352 = scalar_select %p351, %s350, 5
          %s353 = smul.u32 16, %s352
          %p354 = scmp.lt.s32.totalorder %s353, 95
          %s355 = scalar_select %p354, %s353, 95
          %s356 = smul.addr %s355, 4
          %s357 = scalar_lea.vmem %s2, %s356
          %s358 = sadd.s32 %s22, 1
          %p359 = scmp.lt.s32.totalorder %s358, 5
          %s360 = scalar_select %p359, %s358, 5
          %s361 = smul.u32 16, %s360
        $region32: #{tpu_custom_call.1} parent=19 // pred_fallthru
          _
        // Predicated region
        $region33: #{tpu_custom_call.1} parent=19 // pred_check
          %p362 = pneg %p138
        $region34: #{tpu_custom_call.1} parent=19 // pred_check_branch
          %364 = sbr.rel (%p362) target = $region36
        $region35: #{tpu_custom_call.1} parent=19 // pred_region
          %s365 = ssub.s32 %s22, 1
          %p366 = scmp.gt.s32.totalorder %s365, 0
          %s367 = scalar_select %p366, %s365, 0
          %s368 = smul.u32 16, %s367
          %p369 = scmp.lt.s32.totalorder %s368, 95
          %s370 = scalar_select %p369, %s368, 95
          %s371 = smul.addr %s370, 8
          %s372 = scalar_lea.vmem %s3, %s371
          %s373 = ssub.s32 %s22, 1
          %p374 = scmp.gt.s32.totalorder %s373, 0
          %s375 = scalar_select %p374, %s373, 0
          %s376 = smul.u32 16, %s375
        $region36: #{tpu_custom_call.1} parent=19 // pred_fallthru
          _
        // Predicated region
        $region37: #{tpu_custom_call.1} parent=19 // pred_check
          %p377 = pneg %p164
        $region38: #{tpu_custom_call.1} parent=19 // pred_check_branch
          %379 = sbr.rel (%p377) target = $region40
        $region39: #{tpu_custom_call.1} parent=19 // pred_region
          %s380 = smul.u32 16, %s22
          %p381 = scmp.lt.s32.totalorder %s380, 95
          %s382 = scalar_select %p381, %s380, 95
          %s383 = smul.addr %s382, 8
          %s384 = scalar_lea.vmem %s4, %s383
          %s385 = smul.u32 16, %s22
        $region40: #{tpu_custom_call.1} parent=19 // pred_fallthru
          _
        // Predicated region
        $region41: #{tpu_custom_call.1} parent=19 // pred_check
          %p386 = pneg %p196
        $region42: #{tpu_custom_call.1} parent=19 // pred_check_branch
          %388 = sbr.rel (%p386) target = $region44
        $region43: #{tpu_custom_call.1} parent=19 // pred_region
          %s389 = sadd.s32 %s22, 1
          %p390 = scmp.lt.s32.totalorder %s389, 5
          %s391 = scalar_select %p390, %s389, 5
          %s392 = smul.u32 16, %s391
          %p393 = scmp.lt.s32.totalorder %s392, 95
          %s394 = scalar_select %p393, %s392, 95
          %s395 = smul.addr %s394, 8
          %s396 = scalar_lea.vmem %s5, %s395
          %s397 = sadd.s32 %s22, 1
          %p398 = scmp.lt.s32.totalorder %s397, 5
          %s399 = scalar_select %p398, %s397, 5
          %s400 = smul.u32 16, %s399
        $region44: #{tpu_custom_call.1} parent=19 // pred_fallthru
          _
      $region20: #{tpu_custom_call.1} parent=5 // pred_fallthru
        _
      %p401 = scmp.le.s32.totalorder 1, %s22
      %p402 = scmp.lt.s32.totalorder %s22, 7
      %p403 = pnand %p401, %p402
      %p404 = pneg %p403
      // Predicated region
      $region45: #{tpu_custom_call.1} parent=5 // pred_check
        _
      $region46: #{tpu_custom_call.1} parent=5 // pred_check_branch
        %406 = sbr.rel (%p403) target = $region48
      $region47: #{tpu_custom_call.1} parent=5 // pred_region
        %s407 = ssub.s32 %s22, 1
        %s408 = ssub.s32 %s27, 1
        %p409 = scmp.gt.s32.totalorder %s408, 0
        %s410 = scalar_select %p409, %s408, 0
        %s411 = smul.u32 16, %s410
        %p412 = scmp.lt.s32.totalorder %s411, 95
        %s413 = scalar_select %p412, %s411, 95
        %s414 = smul.addr %s413, 4
        %s415 = scalar_lea.vmem %s0, %s414
        %p416 = pneg %p54
        %p417 = pneg %p51
        %s418 = smul.u32 16, %s27
        %p419 = scmp.lt.s32.totalorder %s418, 95
        %s420 = scalar_select %p419, %s418, 95
        %s421 = smul.addr %s420, 4
        %s422 = scalar_lea.vmem %s1, %s421
        %p423 = pneg %p80
        %p424 = pneg %p77
        %s425 = sadd.s32 %s27, 1
        %p426 = scmp.lt.s32.totalorder %s425, 5
        %s427 = scalar_select %p426, %s425, 5
        %s428 = smul.u32 16, %s427
        %p429 = scmp.lt.s32.totalorder %s428, 95
        %s430 = scalar_select %p429, %s428, 95
        %s431 = smul.addr %s430, 4
        %s432 = scalar_lea.vmem %s2, %s431
        %p433 = pneg %p112
        %p434 = pneg %p109
        %s435 = ssub.s32 %s27, 1
        %p436 = scmp.gt.s32.totalorder %s435, 0
        %s437 = scalar_select %p436, %s435, 0
        %s438 = smul.u32 16, %s437
        %p439 = scmp.lt.s32.totalorder %s438, 95
        %s440 = scalar_select %p439, %s438, 95
        %s441 = smul.addr %s440, 8
        %s442 = scalar_lea.vmem %s3, %s441
        %p443 = pneg %p144
        %p444 = pneg %p141
        %s445 = smul.u32 16, %s27
        %p446 = scmp.lt.s32.totalorder %s445, 95
        %s447 = scalar_select %p446, %s445, 95
        %s448 = smul.addr %s447, 8
        %s449 = scalar_lea.vmem %s4, %s448
        %p450 = pneg %p170
        %p451 = pneg %p167
        %s452 = sadd.s32 %s27, 1
        %p453 = scmp.lt.s32.totalorder %s452, 5
        %s454 = scalar_select %p453, %s452, 5
        %s455 = smul.u32 16, %s454
        %p456 = scmp.lt.s32.totalorder %s455, 95
        %s457 = scalar_select %p456, %s455, 95
        %s458 = smul.addr %s457, 8
        %s459 = scalar_lea.vmem %s5, %s458
        %p460 = pneg %p202
        %p461 = pneg %p199
        %p462 = pneg %p223
        %p463 = pneg %p220
        %p464 = pneg %p249
        %p465 = pneg %p246
        %s466 = smul.u32 16, %s27
        %p467 = scmp.lt.s32.totalorder %s466, 95
        %s468 = scalar_select %p467, %s466, 95
        %s469 = smul.addr %s468, 4
        %s470 = scalar_lea.vmem %s7, %s469
        %p471 = pneg %p275
        %p472 = pneg %p272
        %s473 = sand.u32 %s262, 1
        %s474 = scalar_lea.sflag [#allocation3], %s473
        %s475 = sand.u32 %s262, 1
        %s476 = scalar_lea.vmem [#allocation2], %s475
        %p477 = pneg %p301
        %p478 = pneg %p298
        %s479 = sand.u32 %s288, 1
        %s480 = scalar_lea.sflag [#allocation5], %s479
        %s481 = sand.u32 %s288, 1
        %s482 = scalar_lea.vmem [#allocation4], %s481
        %s483 = ssub.s32 %s27, 1
        %p484 = scmp.gt.s32.totalorder %s483, 0
        %s485 = scalar_select %p484, %s483, 0
        %s486 = smul.u32 16, %s485
        %p487 = scmp.lt.s32.totalorder %s486, 95
        %s488 = scalar_select %p487, %s486, 95
        %s489 = smul.addr %s488, 4
        %s490 = scalar_lea.vmem %s0, %s489
        %s491 = ssub.s32 %s27, 1
        %p492 = scmp.gt.s32.totalorder %s491, 0
        %s493 = scalar_select %p492, %s491, 0
        %s494 = smul.u32 16, %s493
        %s495 = smul.u32 16, %s27
        %p496 = scmp.lt.s32.totalorder %s495, 95
        %s497 = scalar_select %p496, %s495, 95
        %s498 = smul.addr %s497, 4
        %s499 = scalar_lea.vmem %s1, %s498
        %s500 = smul.u32 16, %s27
        %s501 = sadd.s32 %s27, 1
        %p502 = scmp.lt.s32.totalorder %s501, 5
        %s503 = scalar_select %p502, %s501, 5
        %s504 = smul.u32 16, %s503
        %p505 = scmp.lt.s32.totalorder %s504, 95
        %s506 = scalar_select %p505, %s504, 95
        %s507 = smul.addr %s506, 4
        %s508 = scalar_lea.vmem %s2, %s507
        %s509 = sadd.s32 %s27, 1
        %p510 = scmp.lt.s32.totalorder %s509, 5
        %s511 = scalar_select %p510, %s509, 5
        %s512 = smul.u32 16, %s511
        %s513 = ssub.s32 %s27, 1
        %p514 = scmp.gt.s32.totalorder %s513, 0
        %s515 = scalar_select %p514, %s513, 0
        %s516 = smul.u32 16, %s515
        %p517 = scmp.lt.s32.totalorder %s516, 95
        %s518 = scalar_select %p517, %s516, 95
        %s519 = smul.addr %s518, 8
        %s520 = scalar_lea.vmem %s3, %s519
        %s521 = ssub.s32 %s27, 1
        %p522 = scmp.gt.s32.totalorder %s521, 0
        %s523 = scalar_select %p522, %s521, 0
        %s524 = smul.u32 16, %s523
        %s525 = smul.u32 16, %s27
        %p526 = scmp.lt.s32.totalorder %s525, 95
        %s527 = scalar_select %p526, %s525, 95
        %s528 = smul.addr %s527, 8
        %s529 = scalar_lea.vmem %s4, %s528
        %s530 = smul.u32 16, %s27
        %s531 = sadd.s32 %s27, 1
        %p532 = scmp.lt.s32.totalorder %s531, 5
        %s533 = scalar_select %p532, %s531, 5
        %s534 = smul.u32 16, %s533
        %p535 = scmp.lt.s32.totalorder %s534, 95
        %s536 = scalar_select %p535, %s534, 95
        %s537 = smul.addr %s536, 8
        %s538 = scalar_lea.vmem %s5, %s537
        %s539 = sadd.s32 %s27, 1
        %p540 = scmp.lt.s32.totalorder %s539, 5
        %s541 = scalar_select %p540, %s539, 5
        %s542 = smul.u32 16, %s541
        %s543 = smul.u32 16, %s27
        %p544 = scmp.lt.s32.totalorder %s543, 95
        %s545 = scalar_select %p544, %s543, 95
        %s546 = smul.addr %s545, 4
        %s547 = scalar_lea.vmem %s7, %s546
        %s548 = smul.u32 16, %s27
        %v552 = vld [vmem:[%s490 + $0x30] sm:$0xf]
        %v553 = vld [vmem:[%s490 + $0x34] sm:$0xf]
        %v554 = vld [vmem:[%s490 + $0x38] sm:$0xf]
        %v555 = vld [vmem:[%s490 + $0x3c] sm:$0xf]
        %v556 = vld [vmem:[%s499] sm:$0xf]
        %v557 = vld [vmem:[%s499 + $0x4] sm:$0xf]
        %v558 = vld [vmem:[%s499 + $0x8] sm:$0xf]
        %v559 = vld [vmem:[%s499 + $0xc] sm:$0xf]
        %v560 = vld [vmem:[%s499 + $0x10] sm:$0xf]
        %v561 = vld [vmem:[%s499 + $0x14] sm:$0xf]
        %v562 = vld [vmem:[%s499 + $0x18] sm:$0xf]
        %v563 = vld [vmem:[%s499 + $0x1c] sm:$0xf]
        %v564 = vld [vmem:[%s499 + $0x20] sm:$0xf]
        %v565 = vld [vmem:[%s499 + $0x24] sm:$0xf]
        %v566 = vld [vmem:[%s499 + $0x28] sm:$0xf]
        %v567 = vld [vmem:[%s499 + $0x2c] sm:$0xf]
        %v568 = vld [vmem:[%s499 + $0x30] sm:$0xf]
        %v569 = vld [vmem:[%s499 + $0x34] sm:$0xf]
        %v570 = vld [vmem:[%s499 + $0x38] sm:$0xf]
        %v571 = vld [vmem:[%s499 + $0x3c] sm:$0xf]
        %v572 = vld [vmem:[%s508] sm:$0xf]
        %v573 = vld [vmem:[%s508 + $0x4] sm:$0xf]
        %v574 = vld [vmem:[%s508 + $0x8] sm:$0xf]
        %v575 = vld [vmem:[%s508 + $0xc] sm:$0xf]
        %v580 = vunpack.c.l.b16 %v552
        %v581 = vunpack.c.l.b16 %v553
        %v582 = vunpack.c.l.b16 %v554
        %v583 = vunpack.c.l.b16 %v555
        %v584 = vpack.c.b16 %v581, %v580
        %v585 = vpack.c.b16 %v583, %v582
        %v604 = vunpack.c.l.b16 %v556
        %v605 = vunpack.c.l.b16 %v557
        %v606 = vunpack.c.l.b16 %v558
        %v607 = vunpack.c.l.b16 %v559
        %v608 = vunpack.c.l.b16 %v560
        %v609 = vunpack.c.l.b16 %v561
        %v610 = vunpack.c.l.b16 %v562
        %v611 = vunpack.c.l.b16 %v563
        %v612 = vunpack.c.l.b16 %v564
        %v613 = vunpack.c.l.b16 %v565
        %v614 = vunpack.c.l.b16 %v566
        %v615 = vunpack.c.l.b16 %v567
        %v616 = vunpack.c.l.b16 %v568
        %v617 = vunpack.c.l.b16 %v569
        %v618 = vunpack.c.l.b16 %v570
        %v619 = vunpack.c.l.b16 %v571
        %v620 = vpack.c.b16 %v605, %v604
        %v621 = vpack.c.b16 %v607, %v606
        %v622 = vpack.c.b16 %v609, %v608
        %v623 = vpack.c.b16 %v611, %v610
        %v624 = vpack.c.b16 %v613, %v612
        %v625 = vpack.c.b16 %v615, %v614
        %v626 = vpack.c.b16 %v617, %v616
        %v627 = vpack.c.b16 %v619, %v618
        %v640 = vunpack.c.l.b16 %v572
        %v641 = vunpack.c.l.b16 %v573
        %v642 = vunpack.c.l.b16 %v574
        %v643 = vunpack.c.l.b16 %v575
        %v644 = vpack.c.b16 %v641, %v640
        %v645 = vpack.c.b16 %v643, %v642
        %v648 = vld [vmem:[%s520 + $0x60] sm:$0xff]
        %v649 = vld [vmem:[%s520 + $0x68] sm:$0xff]
        %v650 = vld [vmem:[%s520 + $0x70] sm:$0xff]
        %v651 = vld [vmem:[%s520 + $0x78] sm:$0xff]
        %v652 = vld [vmem:[%s529] sm:$0xff]
        %v653 = vld [vmem:[%s529 + $0x8] sm:$0xff]
        %v654 = vld [vmem:[%s529 + $0x10] sm:$0xff]
        %v655 = vld [vmem:[%s529 + $0x18] sm:$0xff]
        %v656 = vld [vmem:[%s529 + $0x20] sm:$0xff]
        %v657 = vld [vmem:[%s529 + $0x28] sm:$0xff]
        %v658 = vld [vmem:[%s529 + $0x30] sm:$0xff]
        %v659 = vld [vmem:[%s529 + $0x38] sm:$0xff]
        %v660 = vld [vmem:[%s529 + $0x40] sm:$0xff]
        %v661 = vld [vmem:[%s529 + $0x48] sm:$0xff]
        %v662 = vld [vmem:[%s529 + $0x50] sm:$0xff]
        %v663 = vld [vmem:[%s529 + $0x58] sm:$0xff]
        %v664 = vld [vmem:[%s529 + $0x60] sm:$0xff]
        %v665 = vld [vmem:[%s529 + $0x68] sm:$0xff]
        %v666 = vld [vmem:[%s529 + $0x70] sm:$0xff]
        %v667 = vld [vmem:[%s529 + $0x78] sm:$0xff]
        %v668 = vld [vmem:[%s538] sm:$0xff]
        %v669 = vld [vmem:[%s538 + $0x8] sm:$0xff]
        %v670 = vld [vmem:[%s538 + $0x10] sm:$0xff]
        %v671 = vld [vmem:[%s538 + $0x18] sm:$0xff]
        %vm672 = vcmp.gt.f32.partialorder %v648, 0.5
        %vm673 = vcmp.gt.f32.partialorder %v649, 0.5
        %vm674 = vcmp.gt.f32.partialorder %v650, 0.5
        %vm675 = vcmp.gt.f32.partialorder %v651, 0.5
        %vm676 = vcmp.gt.f32.partialorder %v652, 0.5
        %vm677 = vcmp.gt.f32.partialorder %v653, 0.5
        %vm678 = vcmp.gt.f32.partialorder %v654, 0.5
        %vm679 = vcmp.gt.f32.partialorder %v655, 0.5
        %vm680 = vcmp.gt.f32.partialorder %v656, 0.5
        %vm681 = vcmp.gt.f32.partialorder %v657, 0.5
        %vm682 = vcmp.gt.f32.partialorder %v658, 0.5
        %vm683 = vcmp.gt.f32.partialorder %v659, 0.5
        %vm684 = vcmp.gt.f32.partialorder %v660, 0.5
        %vm685 = vcmp.gt.f32.partialorder %v661, 0.5
        %vm686 = vcmp.gt.f32.partialorder %v662, 0.5
        %vm687 = vcmp.gt.f32.partialorder %v663, 0.5
        %vm688 = vcmp.gt.f32.partialorder %v664, 0.5
        %vm689 = vcmp.gt.f32.partialorder %v665, 0.5
        %vm690 = vcmp.gt.f32.partialorder %v666, 0.5
        %vm691 = vcmp.gt.f32.partialorder %v667, 0.5
        %vm692 = vcmp.gt.f32.partialorder %v668, 0.5
        %vm693 = vcmp.gt.f32.partialorder %v669, 0.5
        %vm694 = vcmp.gt.f32.partialorder %v670, 0.5
        %vm695 = vcmp.gt.f32.partialorder %v671, 0.5
        %v696 = vsel %vm672, 1, 0
        %v697 = vsel %vm673, 1, 0
        %v698 = vsel %vm674, 1, 0
        %v699 = vsel %vm675, 1, 0
        %v700 = vsel %vm676, 1, 0
        %v701 = vsel %vm677, 1, 0
        %v702 = vsel %vm678, 1, 0
        %v703 = vsel %vm679, 1, 0
        %v704 = vsel %vm680, 1, 0
        %v705 = vsel %vm681, 1, 0
        %v706 = vsel %vm682, 1, 0
        %v707 = vsel %vm683, 1, 0
        %v708 = vsel %vm684, 1, 0
        %v709 = vsel %vm685, 1, 0
        %v710 = vsel %vm686, 1, 0
        %v711 = vsel %vm687, 1, 0
        %v712 = vsel %vm688, 1, 0
        %v713 = vsel %vm689, 1, 0
        %v714 = vsel %vm690, 1, 0
        %v715 = vsel %vm691, 1, 0
        %v716 = vsel %vm692, 1, 0
        %v717 = vsel %vm693, 1, 0
        %v718 = vsel %vm694, 1, 0
        %v719 = vsel %vm695, 1, 0
        %720 = vset.pattern.permute.xlu0 0
        %721 = vperm.xlu0 %720, %v696
        %v722 = vpop.permute.xlu0 %721
        %723 = vset.pattern.permute.xlu0 0
        %724 = vperm.xlu0 %723, %v697
        %v725 = vpop.permute.xlu0 %724
        %726 = vset.pattern.permute.xlu0 0
        %727 = vperm.xlu0 %726, %v698
        %v728 = vpop.permute.xlu0 %727
        %729 = vset.pattern.permute.xlu0 0
        %730 = vperm.xlu0 %729, %v699
        %v731 = vpop.permute.xlu0 %730
        %732 = vset.pattern.permute.xlu0 0
        %733 = vperm.xlu0 %732, %v700
        %v734 = vpop.permute.xlu0 %733
        %735 = vset.pattern.permute.xlu0 0
        %736 = vperm.xlu0 %735, %v701
        %v737 = vpop.permute.xlu0 %736
        %738 = vset.pattern.permute.xlu0 0
        %739 = vperm.xlu0 %738, %v702
        %v740 = vpop.permute.xlu0 %739
        %741 = vset.pattern.permute.xlu0 0
        %742 = vperm.xlu0 %741, %v703
        %v743 = vpop.permute.xlu0 %742
        %744 = vset.pattern.permute.xlu0 0
        %745 = vperm.xlu0 %744, %v704
        %v746 = vpop.permute.xlu0 %745
        %747 = vset.pattern.permute.xlu0 0
        %748 = vperm.xlu0 %747, %v705
        %v749 = vpop.permute.xlu0 %748
        %750 = vset.pattern.permute.xlu0 0
        %751 = vperm.xlu0 %750, %v706
        %v752 = vpop.permute.xlu0 %751
        %753 = vset.pattern.permute.xlu0 0
        %754 = vperm.xlu0 %753, %v707
        %v755 = vpop.permute.xlu0 %754
        %756 = vset.pattern.permute.xlu0 0
        %757 = vperm.xlu0 %756, %v708
        %v758 = vpop.permute.xlu0 %757
        %759 = vset.pattern.permute.xlu0 0
        %760 = vperm.xlu0 %759, %v709
        %v761 = vpop.permute.xlu0 %760
        %762 = vset.pattern.permute.xlu0 0
        %763 = vperm.xlu0 %762, %v710
        %v764 = vpop.permute.xlu0 %763
        %765 = vset.pattern.permute.xlu0 0
        %766 = vperm.xlu0 %765, %v711
        %v767 = vpop.permute.xlu0 %766
        %768 = vset.pattern.permute.xlu0 0
        %769 = vperm.xlu0 %768, %v712
        %v770 = vpop.permute.xlu0 %769
        %771 = vset.pattern.permute.xlu0 0
        %772 = vperm.xlu0 %771, %v713
        %v773 = vpop.permute.xlu0 %772
        %774 = vset.pattern.permute.xlu0 0
        %775 = vperm.xlu0 %774, %v714
        %v776 = vpop.permute.xlu0 %775
        %777 = vset.pattern.permute.xlu0 0
        %778 = vperm.xlu0 %777, %v715
        %v779 = vpop.permute.xlu0 %778
        %780 = vset.pattern.permute.xlu0 0
        %781 = vperm.xlu0 %780, %v716
        %v782 = vpop.permute.xlu0 %781
        %783 = vset.pattern.permute.xlu0 0
        %784 = vperm.xlu0 %783, %v717
        %v785 = vpop.permute.xlu0 %784
        %786 = vset.pattern.permute.xlu0 0
        %787 = vperm.xlu0 %786, %v718
        %v788 = vpop.permute.xlu0 %787
        %789 = vset.pattern.permute.xlu0 0
        %790 = vperm.xlu0 %789, %v719
        %v791 = vpop.permute.xlu0 %790
        %vm792 = vcmp.eq.s32.totalorder %v722, 1
        %vm793 = vcmp.eq.s32.totalorder %v725, 1
        %vm794 = vcmp.eq.s32.totalorder %v728, 1
        %vm795 = vcmp.eq.s32.totalorder %v731, 1
        %vm796 = vcmp.eq.s32.totalorder %v734, 1
        %vm797 = vcmp.eq.s32.totalorder %v737, 1
        %vm798 = vcmp.eq.s32.totalorder %v740, 1
        %vm799 = vcmp.eq.s32.totalorder %v743, 1
        %vm800 = vcmp.eq.s32.totalorder %v746, 1
        %vm801 = vcmp.eq.s32.totalorder %v749, 1
        %vm802 = vcmp.eq.s32.totalorder %v752, 1
        %vm803 = vcmp.eq.s32.totalorder %v755, 1
        %vm804 = vcmp.eq.s32.totalorder %v758, 1
        %vm805 = vcmp.eq.s32.totalorder %v761, 1
        %vm806 = vcmp.eq.s32.totalorder %v764, 1
        %vm807 = vcmp.eq.s32.totalorder %v767, 1
        %vm808 = vcmp.eq.s32.totalorder %v770, 1
        %vm809 = vcmp.eq.s32.totalorder %v773, 1
        %vm810 = vcmp.eq.s32.totalorder %v776, 1
        %vm811 = vcmp.eq.s32.totalorder %v779, 1
        %vm812 = vcmp.eq.s32.totalorder %v782, 1
        %vm813 = vcmp.eq.s32.totalorder %v785, 1
        %vm814 = vcmp.eq.s32.totalorder %v788, 1
        %vm815 = vcmp.eq.s32.totalorder %v791, 1
        %vm816 = vmpackc.low %vm792, %vm792
        %vm817 = vmpackc.low %vm793, %vm793
        %vm818 = vmpackc.low %vm794, %vm794
        %vm819 = vmpackc.low %vm795, %vm795
        %vm820 = vmpackc.low %vm796, %vm796
        %vm821 = vmpackc.low %vm797, %vm797
        %vm822 = vmpackc.low %vm798, %vm798
        %vm823 = vmpackc.low %vm799, %vm799
        %vm824 = vmpackc.low %vm800, %vm800
        %vm825 = vmpackc.low %vm801, %vm801
        %vm826 = vmpackc.low %vm802, %vm802
        %vm827 = vmpackc.low %vm803, %vm803
        %vm828 = vmpackc.low %vm804, %vm804
        %vm829 = vmpackc.low %vm805, %vm805
        %vm830 = vmpackc.low %vm806, %vm806
        %vm831 = vmpackc.low %vm807, %vm807
        %vm832 = vmpackc.low %vm808, %vm808
        %vm833 = vmpackc.low %vm809, %vm809
        %vm834 = vmpackc.low %vm810, %vm810
        %vm835 = vmpackc.low %vm811, %vm811
        %vm836 = vmpackc.low %vm812, %vm812
        %vm837 = vmpackc.low %vm813, %vm813
        %vm838 = vmpackc.low %vm814, %vm814
        %vm839 = vmpackc.low %vm815, %vm815
        %v840 = vsel %vm816, 65537, 0
        %v841 = vsel %vm817, 65537, 0
        %v842 = vsel %vm818, 65537, 0
        %v843 = vsel %vm819, 65537, 0
        %v844 = vsel %vm820, 65537, 0
        %v845 = vsel %vm821, 65537, 0
        %v846 = vsel %vm822, 65537, 0
        %v847 = vsel %vm823, 65537, 0
        %v848 = vsel %vm824, 65537, 0
        %v849 = vsel %vm825, 65537, 0
        %v850 = vsel %vm826, 65537, 0
        %v851 = vsel %vm827, 65537, 0
        %v852 = vsel %vm828, 65537, 0
        %v853 = vsel %vm829, 65537, 0
        %v854 = vsel %vm830, 65537, 0
        %v855 = vsel %vm831, 65537, 0
        %v856 = vsel %vm832, 65537, 0
        %v857 = vsel %vm833, 65537, 0
        %v858 = vsel %vm834, 65537, 0
        %v859 = vsel %vm835, 65537, 0
        %v860 = vsel %vm836, 65537, 0
        %v861 = vsel %vm837, 65537, 0
        %v862 = vsel %vm838, 65537, 0
        %v863 = vsel %vm839, 65537, 0
        %v864 = vunpack.c.l.b16 %v840
        %v865 = vunpack.c.l.b16 %v841
        %v866 = vunpack.c.l.b16 %v842
        %v867 = vunpack.c.l.b16 %v843
        %v868 = vunpack.c.l.b16 %v844
        %v869 = vunpack.c.l.b16 %v845
        %v870 = vunpack.c.l.b16 %v846
        %v871 = vunpack.c.l.b16 %v847
        %v872 = vunpack.c.l.b16 %v848
        %v873 = vunpack.c.l.b16 %v849
        %v874 = vunpack.c.l.b16 %v850
        %v875 = vunpack.c.l.b16 %v851
        %v876 = vunpack.c.l.b16 %v852
        %v877 = vunpack.c.l.b16 %v853
        %v878 = vunpack.c.l.b16 %v854
        %v879 = vunpack.c.l.b16 %v855
        %v880 = vunpack.c.l.b16 %v856
        %v881 = vunpack.c.l.b16 %v857
        %v882 = vunpack.c.l.b16 %v858
        %v883 = vunpack.c.l.b16 %v859
        %v884 = vunpack.c.l.b16 %v860
        %v885 = vunpack.c.l.b16 %v861
        %v886 = vunpack.c.l.b16 %v862
        %v887 = vunpack.c.l.b16 %v863
        %v888 = vpack.c.b16 %v865, %v864
        %v889 = vpack.c.b16 %v867, %v866
        %v890 = vpack.c.b16 %v869, %v868
        %v891 = vpack.c.b16 %v871, %v870
        %v892 = vpack.c.b16 %v873, %v872
        %v893 = vpack.c.b16 %v875, %v874
        %v894 = vpack.c.b16 %v877, %v876
        %v895 = vpack.c.b16 %v879, %v878
        %v896 = vpack.c.b16 %v881, %v880
        %v897 = vpack.c.b16 %v883, %v882
        %v898 = vpack.c.b16 %v885, %v884
        %v899 = vpack.c.b16 %v887, %v886
        %vm900 = vcmp.ne.s16.totalorder %v888, 0
        %vm901 = vcmp.ne.s16.totalorder %v889, 0
        %vm902 = vcmp.ne.s16.totalorder %v890, 0
        %vm903 = vcmp.ne.s16.totalorder %v891, 0
        %vm904 = vcmp.ne.s16.totalorder %v892, 0
        %vm905 = vcmp.ne.s16.totalorder %v893, 0
        %vm906 = vcmp.ne.s16.totalorder %v894, 0
        %vm907 = vcmp.ne.s16.totalorder %v895, 0
        %vm908 = vcmp.ne.s16.totalorder %v896, 0
        %vm909 = vcmp.ne.s16.totalorder %v897, 0
        %vm910 = vcmp.ne.s16.totalorder %v898, 0
        %vm911 = vcmp.ne.s16.totalorder %v899, 0
        %v912 = vsel %vm900, %v584, 0
        %v913 = vsel %vm901, %v585, 0
        %v914 = vsel %vm902, %v620, 0
        %v915 = vsel %vm903, %v621, 0
        %v916 = vsel %vm904, %v622, 0
        %v917 = vsel %vm905, %v623, 0
        %v918 = vsel %vm906, %v624, 0
        %v919 = vsel %vm907, %v625, 0
        %v920 = vsel %vm908, %v626, 0
        %v921 = vsel %vm909, %v627, 0
        %v922 = vsel %vm910, %v644, 0
        %v923 = vsel %vm911, %v645, 0
        %v924 = vld [vmem:[%s6] sm:$0xf]
        %v925 = vld [vmem:[%s6 + $0x4] sm:$0xf]
        %vm935 = vcmask 1040384
        %v936 = vrot.slane %v912, 7
        %v937 = vrot.slane %v913, 7
        %v938 = vsel %vm935, %v936, %v937
        %v939 = vrot.slane %v914, 7
        %v940 = vsel %vm935, %v937, %v939
        %v941 = vrot.slane %v915, 7
        %v942 = vsel %vm935, %v939, %v941
        %v943 = vrot.slane %v916, 7
        %v944 = vsel %vm935, %v941, %v943
        %v945 = vrot.slane %v917, 7
        %v946 = vsel %vm935, %v943, %v945
        %v947 = vrot.slane %v918, 7
        %v948 = vsel %vm935, %v945, %v947
        %v949 = vrot.slane %v919, 7
        %v950 = vsel %vm935, %v947, %v949
        %v951 = vrot.slane %v920, 7
        %v952 = vsel %vm935, %v949, %v951
        %vm953 = vcmask 64512
        %v955 = vsel %vm953, %v938, 0
        %v958 = vsel %vm953, %v940, 0
        %v961 = vsel %vm953, %v942, 0
        %v964 = vsel %vm953, %v944, 0
        %v967 = vsel %vm953, %v946, 0
        %v970 = vsel %vm953, %v948, 0
        %v973 = vsel %vm953, %v950, 0
        %v976 = vsel %vm953, %v952, 0
        %vm978 = vcmask 1043456
        %v980 = vsel %vm978, %v925, 0
        %982 = vmatprep.subr.bf16.mxu0 0
        %983 = vmatpush1.bf16.msra.mxu0 0
        %984 = vmatprep.subr.bf16.mxu0 0
        %985 = vmatpush1.bf16.msra.mxu0 0
        %986 = vmatprep.subr.bf16.mxu0 0
        %987 = vmatpush1.bf16.msra.mxu0 0
        %988 = vmatprep.subr.bf16.mxu0 0
        %989 = vmatpush1.bf16.msra.mxu0 0
        %990 = vmatprep.subr.bf16.mxu0 0
        %991 = vmatpush1.bf16.msra.mxu0 0
        %992 = vmatprep.subr.bf16.mxu0 0
        %993 = vmatpush1.bf16.msra.mxu0 0
        %994 = vmatprep.subr.bf16.mxu0 0
        %995 = vmatpush1.bf16.msra.mxu0 0
        %996 = vmatprep.subr.bf16.mxu0 0
        %997 = vmatpush1.bf16.msra.mxu0 %v980
        %998 = vmatprep.subr.bf16.mxu0 0
        %999 = vmatpush2.bf16.msra.mxu0 0
        %1000 = vmatprep.subr.bf16.mxu0 0
        %1001 = vmatpush2.bf16.msra.mxu0 0
        %1002 = vmatprep.subr.bf16.mxu0 0
        %1003 = vmatpush2.bf16.msra.mxu0 0
        %1004 = vmatprep.subr.bf16.mxu0 0
        %1005 = vmatpush2.bf16.msra.mxu0 0
        %1006 = vmatprep.subr.bf16.mxu0 0
        %1007 = vmatpush2.bf16.msra.mxu0 0
        %1008 = vmatprep.subr.bf16.mxu0 0
        %1009 = vmatpush2.bf16.msra.mxu0 0
        %1010 = vmatprep.subr.bf16.mxu0 0
        %1011 = vmatpush2.bf16.msra.mxu0 0
        %1012 = vmatprep.subr.bf16.mxu0 0
        %1013 = vmatpush2.bf16.msra.mxu0 0
        %1014 = vmatprep.mubr.bf16.mxu0 0
        %1015 = vmatmul.mubr.bf16.gmra.mxu0 %v955
        %v1016 = vpop.f32.mrf.mxu0
        %v1017 = vadd.f32 0.0, %v1016
        %v1018 = vpop.f32.mrf.mxu0
        %v1019 = vpop.f32.mrf.mxu0
        %v1020 = vadd.f32 0.0, %v1019
        %v1021 = vpop.f32.mrf.mxu0
        %1022 = vmatprep.mubr.bf16.mxu0 0
        %1023 = vmatmul.mubr.bf16.gmra.mxu0 %v958
        %v1024 = vpop.f32.mrf.mxu0
        %v1025 = vadd.f32 0.0, %v1024
        %v1026 = vpop.f32.mrf.mxu0
        %v1027 = vpop.f32.mrf.mxu0
        %v1028 = vadd.f32 0.0, %v1027
        %v1029 = vpop.f32.mrf.mxu0
        %1030 = vmatprep.mubr.bf16.mxu0 0
        %1031 = vmatmul.mubr.bf16.gmra.mxu0 %v961
        %v1032 = vpop.f32.mrf.mxu0
        %v1033 = vadd.f32 0.0, %v1032
        %v1034 = vpop.f32.mrf.mxu0
        %v1035 = vpop.f32.mrf.mxu0
        %v1036 = vadd.f32 0.0, %v1035
        %v1037 = vpop.f32.mrf.mxu0
        %1038 = vmatprep.mubr.bf16.mxu0 0
        %1039 = vmatmul.mubr.bf16.gmra.mxu0 %v964
        %v1040 = vpop.f32.mrf.mxu0
        %v1041 = vadd.f32 0.0, %v1040
        %v1042 = vpop.f32.mrf.mxu0
        %v1043 = vpop.f32.mrf.mxu0
        %v1044 = vadd.f32 0.0, %v1043
        %v1045 = vpop.f32.mrf.mxu0
        %1046 = vmatprep.mubr.bf16.mxu0 0
        %1047 = vmatmul.mubr.bf16.gmra.mxu0 %v967
        %v1048 = vpop.f32.mrf.mxu0
        %v1049 = vadd.f32 0.0, %v1048
        %v1050 = vpop.f32.mrf.mxu0
        %v1051 = vpop.f32.mrf.mxu0
        %v1052 = vadd.f32 0.0, %v1051
        %v1053 = vpop.f32.mrf.mxu0
        %1054 = vmatprep.mubr.bf16.mxu0 0
        %1055 = vmatmul.mubr.bf16.gmra.mxu0 %v970
        %v1056 = vpop.f32.mrf.mxu0
        %v1057 = vadd.f32 0.0, %v1056
        %v1058 = vpop.f32.mrf.mxu0
        %v1059 = vpop.f32.mrf.mxu0
        %v1060 = vadd.f32 0.0, %v1059
        %v1061 = vpop.f32.mrf.mxu0
        %1062 = vmatprep.mubr.bf16.mxu0 0
        %1063 = vmatmul.mubr.bf16.gmra.mxu0 %v973
        %v1064 = vpop.f32.mrf.mxu0
        %v1065 = vadd.f32 0.0, %v1064
        %v1066 = vpop.f32.mrf.mxu0
        %v1067 = vpop.f32.mrf.mxu0
        %v1068 = vadd.f32 0.0, %v1067
        %v1069 = vpop.f32.mrf.mxu0
        %1070 = vmatprep.mubr.bf16.mxu0 0
        %1071 = vmatmul.mubr.bf16.gmra.mxu0 %v976
        %v1072 = vpop.f32.mrf.mxu0
        %v1073 = vadd.f32 0.0, %v1072
        %v1074 = vpop.f32.mrf.mxu0
        %v1075 = vpop.f32.mrf.mxu0
        %v1076 = vadd.f32 0.0, %v1075
        %v1077 = vpop.f32.mrf.mxu0
        %1078 = vdwg.mxu0
        %vm1079 = vsmask.f32 1280
        %v1081 = vshrl.u32 %v912, 16
        %v1083 = vrot.slane %v1081, 6
        %v1084 = vshll.u32 %v912, 16
        %v1086 = vrot.slane %v1084, 7
        %v1087 = vor.u32 %v1083, %v1086
        %v1089 = vshrl.u32 %v913, 16
        %v1091 = vrot.slane %v1089, 6
        %v1092 = vshll.u32 %v913, 16
        %v1094 = vrot.slane %v1092, 7
        %v1095 = vor.u32 %v1091, %v1094
        %v1096 = vsel %vm1079, %v1087, %v1095
        %v1098 = vshrl.u32 %v914, 16
        %v1100 = vrot.slane %v1098, 6
        %v1101 = vshll.u32 %v914, 16
        %v1103 = vrot.slane %v1101, 7
        %v1104 = vor.u32 %v1100, %v1103
        %v1105 = vsel %vm1079, %v1095, %v1104
        %v1107 = vshrl.u32 %v915, 16
        %v1109 = vrot.slane %v1107, 6
        %v1110 = vshll.u32 %v915, 16
        %v1112 = vrot.slane %v1110, 7
        %v1113 = vor.u32 %v1109, %v1112
        %v1114 = vsel %vm1079, %v1104, %v1113
        %v1116 = vshrl.u32 %v916, 16
        %v1118 = vrot.slane %v1116, 6
        %v1119 = vshll.u32 %v916, 16
        %v1121 = vrot.slane %v1119, 7
        %v1122 = vor.u32 %v1118, %v1121
        %v1123 = vsel %vm1079, %v1113, %v1122
        %v1125 = vshrl.u32 %v917, 16
        %v1127 = vrot.slane %v1125, 6
        %v1128 = vshll.u32 %v917, 16
        %v1130 = vrot.slane %v1128, 7
        %v1131 = vor.u32 %v1127, %v1130
        %v1132 = vsel %vm1079, %v1122, %v1131
        %v1134 = vshrl.u32 %v918, 16
        %v1136 = vrot.slane %v1134, 6
        %v1137 = vshll.u32 %v918, 16
        %v1139 = vrot.slane %v1137, 7
        %v1140 = vor.u32 %v1136, %v1139
        %v1141 = vsel %vm1079, %v1131, %v1140
        %v1143 = vshrl.u32 %v919, 16
        %v1145 = vrot.slane %v1143, 6
        %v1146 = vshll.u32 %v919, 16
        %v1148 = vrot.slane %v1146, 7
        %v1149 = vor.u32 %v1145, %v1148
        %v1150 = vsel %vm1079, %v1140, %v1149
        %v1152 = vshrl.u32 %v920, 16
        %v1154 = vrot.slane %v1152, 6
        %v1155 = vshll.u32 %v920, 16
        %v1157 = vrot.slane %v1155, 7
        %v1158 = vor.u32 %v1154, %v1157
        %v1159 = vsel %vm1079, %v1149, %v1158
        %v1161 = vsel %vm953, %v1096, 0
        %v1164 = vsel %vm953, %v1105, 0
        %v1167 = vsel %vm953, %v1114, 0
        %v1170 = vsel %vm953, %v1123, 0
        %v1173 = vsel %vm953, %v1132, 0
        %v1176 = vsel %vm953, %v1141, 0
        %v1179 = vsel %vm953, %v1150, 0
        %v1182 = vsel %vm953, %v1159, 0
        %v1185 = vsel %vm978, %v924, 0
        %1187 = vmatprep.subr.bf16.mxu0 0
        %1188 = vmatpush1.bf16.msra.mxu0 0
        %1189 = vmatprep.subr.bf16.mxu0 0
        %1190 = vmatpush1.bf16.msra.mxu0 0
        %1191 = vmatprep.subr.bf16.mxu0 0
        %1192 = vmatpush1.bf16.msra.mxu0 0
        %1193 = vmatprep.subr.bf16.mxu0 0
        %1194 = vmatpush1.bf16.msra.mxu0 0
        %1195 = vmatprep.subr.bf16.mxu0 0
        %1196 = vmatpush1.bf16.msra.mxu0 0
        %1197 = vmatprep.subr.bf16.mxu0 0
        %1198 = vmatpush1.bf16.msra.mxu0 0
        %1199 = vmatprep.subr.bf16.mxu0 0
        %1200 = vmatpush1.bf16.msra.mxu0 0
        %1201 = vmatprep.subr.bf16.mxu0 0
        %1202 = vmatpush1.bf16.msra.mxu0 %v1185
        %1203 = vmatprep.subr.bf16.mxu0 0
        %1204 = vmatpush2.bf16.msra.mxu0 0
        %1205 = vmatprep.subr.bf16.mxu0 0
        %1206 = vmatpush2.bf16.msra.mxu0 0
        %1207 = vmatprep.subr.bf16.mxu0 0
        %1208 = vmatpush2.bf16.msra.mxu0 0
        %1209 = vmatprep.subr.bf16.mxu0 0
        %1210 = vmatpush2.bf16.msra.mxu0 0
        %1211 = vmatprep.subr.bf16.mxu0 0
        %1212 = vmatpush2.bf16.msra.mxu0 0
        %1213 = vmatprep.subr.bf16.mxu0 0
        %1214 = vmatpush2.bf16.msra.mxu0 0
        %1215 = vmatprep.subr.bf16.mxu0 0
        %1216 = vmatpush2.bf16.msra.mxu0 0
        %1217 = vmatprep.subr.bf16.mxu0 0
        %1218 = vmatpush2.bf16.msra.mxu0 0
        %1219 = vmatprep.mubr.bf16.mxu0 0
        %1220 = vmatmul.mubr.bf16.gmra.mxu0 %v1161
        %v1221 = vpop.f32.mrf.mxu0
        %v1222 = vadd.f32 %v1017, %v1221
        %v1223 = vpop.f32.mrf.mxu0
        %v1224 = vpop.f32.mrf.mxu0
        %v1225 = vadd.f32 %v1020, %v1224
        %v1226 = vpop.f32.mrf.mxu0
        %1227 = vmatprep.mubr.bf16.mxu0 0
        %1228 = vmatmul.mubr.bf16.gmra.mxu0 %v1164
        %v1229 = vpop.f32.mrf.mxu0
        %v1230 = vadd.f32 %v1025, %v1229
        %v1231 = vpop.f32.mrf.mxu0
        %v1232 = vpop.f32.mrf.mxu0
        %v1233 = vadd.f32 %v1028, %v1232
        %v1234 = vpop.f32.mrf.mxu0
        %1235 = vmatprep.mubr.bf16.mxu0 0
        %1236 = vmatmul.mubr.bf16.gmra.mxu0 %v1167
        %v1237 = vpop.f32.mrf.mxu0
        %v1238 = vadd.f32 %v1033, %v1237
        %v1239 = vpop.f32.mrf.mxu0
        %v1240 = vpop.f32.mrf.mxu0
        %v1241 = vadd.f32 %v1036, %v1240
        %v1242 = vpop.f32.mrf.mxu0
        %1243 = vmatprep.mubr.bf16.mxu0 0
        %1244 = vmatmul.mubr.bf16.gmra.mxu0 %v1170
        %v1245 = vpop.f32.mrf.mxu0
        %v1246 = vadd.f32 %v1041, %v1245
        %v1247 = vpop.f32.mrf.mxu0
        %v1248 = vpop.f32.mrf.mxu0
        %v1249 = vadd.f32 %v1044, %v1248
        %v1250 = vpop.f32.mrf.mxu0
        %1251 = vmatprep.mubr.bf16.mxu0 0
        %1252 = vmatmul.mubr.bf16.gmra.mxu0 %v1173
        %v1253 = vpop.f32.mrf.mxu0
        %v1254 = vadd.f32 %v1049, %v1253
        %v1255 = vpop.f32.mrf.mxu0
        %v1256 = vpop.f32.mrf.mxu0
        %v1257 = vadd.f32 %v1052, %v1256
        %v1258 = vpop.f32.mrf.mxu0
        %1259 = vmatprep.mubr.bf16.mxu0 0
        %1260 = vmatmul.mubr.bf16.gmra.mxu0 %v1176
        %v1261 = vpop.f32.mrf.mxu0
        %v1262 = vadd.f32 %v1057, %v1261
        %v1263 = vpop.f32.mrf.mxu0
        %v1264 = vpop.f32.mrf.mxu0
        %v1265 = vadd.f32 %v1060, %v1264
        %v1266 = vpop.f32.mrf.mxu0
        %1267 = vmatprep.mubr.bf16.mxu0 0
        %1268 = vmatmul.mubr.bf16.gmra.mxu0 %v1179
        %v1269 = vpop.f32.mrf.mxu0
        %v1270 = vadd.f32 %v1065, %v1269
        %v1271 = vpop.f32.mrf.mxu0
        %v1272 = vpop.f32.mrf.mxu0
        %v1273 = vadd.f32 %v1068, %v1272
        %v1274 = vpop.f32.mrf.mxu0
        %1275 = vmatprep.mubr.bf16.mxu0 0
        %1276 = vmatmul.mubr.bf16.gmra.mxu0 %v1182
        %v1277 = vpop.f32.mrf.mxu0
        %v1278 = vadd.f32 %v1073, %v1277
        %v1279 = vpop.f32.mrf.mxu0
        %v1280 = vpop.f32.mrf.mxu0
        %v1281 = vadd.f32 %v1076, %v1280
        %v1282 = vpop.f32.mrf.mxu0
        %1283 = vdwg.mxu0
        %v1284 = vld [vmem:[%s6 + $0x8] sm:$0xf]
        %vm1285 = vsmask.f32 256
        %v1286 = vrot.slane %v1081, 7
        %v1287 = vrot.slane %v1089, 7
        %v1288 = vor.u32 %v1287, %v1092
        %v1289 = vsel %vm1285, %v1286, %v1288
        %v1290 = vrot.slane %v1098, 7
        %v1291 = vor.u32 %v1290, %v1101
        %v1292 = vsel %vm1285, %v1287, %v1291
        %v1293 = vrot.slane %v1107, 7
        %v1294 = vor.u32 %v1293, %v1110
        %v1295 = vsel %vm1285, %v1290, %v1294
        %v1296 = vrot.slane %v1116, 7
        %v1297 = vor.u32 %v1296, %v1119
        %v1298 = vsel %vm1285, %v1293, %v1297
        %v1299 = vrot.slane %v1125, 7
        %v1300 = vor.u32 %v1299, %v1128
        %v1301 = vsel %vm1285, %v1296, %v1300
        %v1302 = vrot.slane %v1134, 7
        %v1303 = vor.u32 %v1302, %v1137
        %v1304 = vsel %vm1285, %v1299, %v1303
        %v1305 = vrot.slane %v1143, 7
        %v1306 = vor.u32 %v1305, %v1146
        %v1307 = vsel %vm1285, %v1302, %v1306
        %v1308 = vrot.slane %v1152, 7
        %v1309 = vor.u32 %v1308, %v1155
        %v1310 = vsel %vm1285, %v1305, %v1309
        %v1312 = vsel %vm953, %v1289, 0
        %v1315 = vsel %vm953, %v1292, 0
        %v1318 = vsel %vm953, %v1295, 0
        %v1321 = vsel %vm953, %v1298, 0
        %v1324 = vsel %vm953, %v1301, 0
        %v1327 = vsel %vm953, %v1304, 0
        %v1330 = vsel %vm953, %v1307, 0
        %v1333 = vsel %vm953, %v1310, 0
        %v1336 = vsel %vm978, %v1284, 0
        %1338 = vmatprep.subr.bf16.mxu0 0
        %1339 = vmatpush1.bf16.msra.mxu0 0
        %1340 = vmatprep.subr.bf16.mxu0 0
        %1341 = vmatpush1.bf16.msra.mxu0 0
        %1342 = vmatprep.subr.bf16.mxu0 0
        %1343 = vmatpush1.bf16.msra.mxu0 0
        %1344 = vmatprep.subr.bf16.mxu0 0
        %1345 = vmatpush1.bf16.msra.mxu0 0
        %1346 = vmatprep.subr.bf16.mxu0 0
        %1347 = vmatpush1.bf16.msra.mxu0 0
        %1348 = vmatprep.subr.bf16.mxu0 0
        %1349 = vmatpush1.bf16.msra.mxu0 0
        %1350 = vmatprep.subr.bf16.mxu0 0
        %1351 = vmatpush1.bf16.msra.mxu0 0
        %1352 = vmatprep.subr.bf16.mxu0 0
        %1353 = vmatpush1.bf16.msra.mxu0 %v1336
        %1354 = vmatprep.subr.bf16.mxu0 0
        %1355 = vmatpush2.bf16.msra.mxu0 0
        %1356 = vmatprep.subr.bf16.mxu0 0
        %1357 = vmatpush2.bf16.msra.mxu0 0
        %1358 = vmatprep.subr.bf16.mxu0 0
        %1359 = vmatpush2.bf16.msra.mxu0 0
        %1360 = vmatprep.subr.bf16.mxu0 0
        %1361 = vmatpush2.bf16.msra.mxu0 0
        %1362 = vmatprep.subr.bf16.mxu0 0
        %1363 = vmatpush2.bf16.msra.mxu0 0
        %1364 = vmatprep.subr.bf16.mxu0 0
        %1365 = vmatpush2.bf16.msra.mxu0 0
        %1366 = vmatprep.subr.bf16.mxu0 0
        %1367 = vmatpush2.bf16.msra.mxu0 0
        %1368 = vmatprep.subr.bf16.mxu0 0
        %1369 = vmatpush2.bf16.msra.mxu0 0
        %1370 = vmatprep.mubr.bf16.mxu0 0
        %1371 = vmatmul.mubr.bf16.gmra.mxu0 %v1312
        %v1372 = vpop.f32.mrf.mxu0
        %v1373 = vadd.f32 0.0, %v1372
        %v1374 = vpop.f32.mrf.mxu0
        %v1375 = vpop.f32.mrf.mxu0
        %v1376 = vadd.f32 0.0, %v1375
        %v1377 = vpop.f32.mrf.mxu0
        %1378 = vmatprep.mubr.bf16.mxu0 0
        %1379 = vmatmul.mubr.bf16.gmra.mxu0 %v1315
        %v1380 = vpop.f32.mrf.mxu0
        %v1381 = vadd.f32 0.0, %v1380
        %v1382 = vpop.f32.mrf.mxu0
        %v1383 = vpop.f32.mrf.mxu0
        %v1384 = vadd.f32 0.0, %v1383
        %v1385 = vpop.f32.mrf.mxu0
        %1386 = vmatprep.mubr.bf16.mxu0 0
        %1387 = vmatmul.mubr.bf16.gmra.mxu0 %v1318
        %v1388 = vpop.f32.mrf.mxu0
        %v1389 = vadd.f32 0.0, %v1388
        %v1390 = vpop.f32.mrf.mxu0
        %v1391 = vpop.f32.mrf.mxu0
        %v1392 = vadd.f32 0.0, %v1391
        %v1393 = vpop.f32.mrf.mxu0
        %1394 = vmatprep.mubr.bf16.mxu0 0
        %1395 = vmatmul.mubr.bf16.gmra.mxu0 %v1321
        %v1396 = vpop.f32.mrf.mxu0
        %v1397 = vadd.f32 0.0, %v1396
        %v1398 = vpop.f32.mrf.mxu0
        %v1399 = vpop.f32.mrf.mxu0
        %v1400 = vadd.f32 0.0, %v1399
        %v1401 = vpop.f32.mrf.mxu0
        %1402 = vmatprep.mubr.bf16.mxu0 0
        %1403 = vmatmul.mubr.bf16.gmra.mxu0 %v1324
        %v1404 = vpop.f32.mrf.mxu0
        %v1405 = vadd.f32 0.0, %v1404
        %v1406 = vpop.f32.mrf.mxu0
        %v1407 = vpop.f32.mrf.mxu0
        %v1408 = vadd.f32 0.0, %v1407
        %v1409 = vpop.f32.mrf.mxu0
        %1410 = vmatprep.mubr.bf16.mxu0 0
        %1411 = vmatmul.mubr.bf16.gmra.mxu0 %v1327
        %v1412 = vpop.f32.mrf.mxu0
        %v1413 = vadd.f32 0.0, %v1412
        %v1414 = vpop.f32.mrf.mxu0
        %v1415 = vpop.f32.mrf.mxu0
        %v1416 = vadd.f32 0.0, %v1415
        %v1417 = vpop.f32.mrf.mxu0
        %1418 = vmatprep.mubr.bf16.mxu0 0
        %1419 = vmatmul.mubr.bf16.gmra.mxu0 %v1330
        %v1420 = vpop.f32.mrf.mxu0
        %v1421 = vadd.f32 0.0, %v1420
        %v1422 = vpop.f32.mrf.mxu0
        %v1423 = vpop.f32.mrf.mxu0
        %v1424 = vadd.f32 0.0, %v1423
        %v1425 = vpop.f32.mrf.mxu0
        %1426 = vmatprep.mubr.bf16.mxu0 0
        %1427 = vmatmul.mubr.bf16.gmra.mxu0 %v1333
        %v1428 = vpop.f32.mrf.mxu0
        %v1429 = vadd.f32 0.0, %v1428
        %v1430 = vpop.f32.mrf.mxu0
        %v1431 = vpop.f32.mrf.mxu0
        %v1432 = vadd.f32 0.0, %v1431
        %v1433 = vpop.f32.mrf.mxu0
        %1434 = vdwg.mxu0
        %v1435 = vadd.f32 %v1222, %v1373
        %v1436 = vadd.f32 %v1225, %v1376
        %v1437 = vadd.f32 %v1230, %v1381
        %v1438 = vadd.f32 %v1233, %v1384
        %v1439 = vadd.f32 %v1238, %v1389
        %v1440 = vadd.f32 %v1241, %v1392
        %v1441 = vadd.f32 %v1246, %v1397
        %v1442 = vadd.f32 %v1249, %v1400
        %v1443 = vadd.f32 %v1254, %v1405
        %v1444 = vadd.f32 %v1257, %v1408
        %v1445 = vadd.f32 %v1262, %v1413
        %v1446 = vadd.f32 %v1265, %v1416
        %v1447 = vadd.f32 %v1270, %v1421
        %v1448 = vadd.f32 %v1273, %v1424
        %v1449 = vadd.f32 %v1278, %v1429
        %v1450 = vadd.f32 %v1281, %v1432
        %v1451 = vld [vmem:[%s6 + $0xc] sm:$0xf]
        %v1453 = vshrl.u32 %v921, 16
        %v1455 = vrot.slane %v1453, 7
        %v1456 = vshll.u32 %v921, 16
        %v1458 = vor.u32 %v1455, %v1456
        %v1459 = vsel %vm1285, %v1308, %v1458
        %v1461 = vsel %vm953, %v1459, 0
        %v1464 = vsel %vm978, %v1451, 0
        %1466 = vmatprep.subr.bf16.mxu0 0
        %1467 = vmatpush1.bf16.msra.mxu0 0
        %1468 = vmatprep.subr.bf16.mxu0 0
        %1469 = vmatpush1.bf16.msra.mxu0 0
        %1470 = vmatprep.subr.bf16.mxu0 0
        %1471 = vmatpush1.bf16.msra.mxu0 0
        %1472 = vmatprep.subr.bf16.mxu0 0
        %1473 = vmatpush1.bf16.msra.mxu0 0
        %1474 = vmatprep.subr.bf16.mxu0 0
        %1475 = vmatpush1.bf16.msra.mxu0 0
        %1476 = vmatprep.subr.bf16.mxu0 0
        %1477 = vmatpush1.bf16.msra.mxu0 0
        %1478 = vmatprep.subr.bf16.mxu0 0
        %1479 = vmatpush1.bf16.msra.mxu0 0
        %1480 = vmatprep.subr.bf16.mxu0 0
        %1481 = vmatpush1.bf16.msra.mxu0 %v1464
        %1482 = vmatprep.subr.bf16.mxu0 0
        %1483 = vmatpush2.bf16.msra.mxu0 0
        %1484 = vmatprep.subr.bf16.mxu0 0
        %1485 = vmatpush2.bf16.msra.mxu0 0
        %1486 = vmatprep.subr.bf16.mxu0 0
        %1487 = vmatpush2.bf16.msra.mxu0 0
        %1488 = vmatprep.subr.bf16.mxu0 0
        %1489 = vmatpush2.bf16.msra.mxu0 0
        %1490 = vmatprep.subr.bf16.mxu0 0
        %1491 = vmatpush2.bf16.msra.mxu0 0
        %1492 = vmatprep.subr.bf16.mxu0 0
        %1493 = vmatpush2.bf16.msra.mxu0 0
        %1494 = vmatprep.subr.bf16.mxu0 0
        %1495 = vmatpush2.bf16.msra.mxu0 0
        %1496 = vmatprep.subr.bf16.mxu0 0
        %1497 = vmatpush2.bf16.msra.mxu0 0
        %1498 = vmatprep.mubr.bf16.mxu0 0
        %1499 = vmatmul.mubr.bf16.gmra.mxu0 %v1315
        %v1500 = vpop.f32.mrf.mxu0
        %v1501 = vadd.f32 0.0, %v1500
        %v1502 = vpop.f32.mrf.mxu0
        %v1503 = vpop.f32.mrf.mxu0
        %v1504 = vadd.f32 0.0, %v1503
        %v1505 = vpop.f32.mrf.mxu0
        %1506 = vmatprep.mubr.bf16.mxu0 0
        %1507 = vmatmul.mubr.bf16.gmra.mxu0 %v1318
        %v1508 = vpop.f32.mrf.mxu0
        %v1509 = vadd.f32 0.0, %v1508
        %v1510 = vpop.f32.mrf.mxu0
        %v1511 = vpop.f32.mrf.mxu0
        %v1512 = vadd.f32 0.0, %v1511
        %v1513 = vpop.f32.mrf.mxu0
        %1514 = vmatprep.mubr.bf16.mxu0 0
        %1515 = vmatmul.mubr.bf16.gmra.mxu0 %v1321
        %v1516 = vpop.f32.mrf.mxu0
        %v1517 = vadd.f32 0.0, %v1516
        %v1518 = vpop.f32.mrf.mxu0
        %v1519 = vpop.f32.mrf.mxu0
        %v1520 = vadd.f32 0.0, %v1519
        %v1521 = vpop.f32.mrf.mxu0
        %1522 = vmatprep.mubr.bf16.mxu0 0
        %1523 = vmatmul.mubr.bf16.gmra.mxu0 %v1324
        %v1524 = vpop.f32.mrf.mxu0
        %v1525 = vadd.f32 0.0, %v1524
        %v1526 = vpop.f32.mrf.mxu0
        %v1527 = vpop.f32.mrf.mxu0
        %v1528 = vadd.f32 0.0, %v1527
        %v1529 = vpop.f32.mrf.mxu0
        %1530 = vmatprep.mubr.bf16.mxu0 0
        %1531 = vmatmul.mubr.bf16.gmra.mxu0 %v1327
        %v1532 = vpop.f32.mrf.mxu0
        %v1533 = vadd.f32 0.0, %v1532
        %v1534 = vpop.f32.mrf.mxu0
        %v1535 = vpop.f32.mrf.mxu0
        %v1536 = vadd.f32 0.0, %v1535
        %v1537 = vpop.f32.mrf.mxu0
        %1538 = vmatprep.mubr.bf16.mxu0 0
        %1539 = vmatmul.mubr.bf16.gmra.mxu0 %v1330
        %v1540 = vpop.f32.mrf.mxu0
        %v1541 = vadd.f32 0.0, %v1540
        %v1542 = vpop.f32.mrf.mxu0
        %v1543 = vpop.f32.mrf.mxu0
        %v1544 = vadd.f32 0.0, %v1543
        %v1545 = vpop.f32.mrf.mxu0
        %1546 = vmatprep.mubr.bf16.mxu0 0
        %1547 = vmatmul.mubr.bf16.gmra.mxu0 %v1333
        %v1548 = vpop.f32.mrf.mxu0
        %v1549 = vadd.f32 0.0, %v1548
        %v1550 = vpop.f32.mrf.mxu0
        %v1551 = vpop.f32.mrf.mxu0
        %v1552 = vadd.f32 0.0, %v1551
        %v1553 = vpop.f32.mrf.mxu0
        %1554 = vmatprep.mubr.bf16.mxu0 0
        %1555 = vmatmul.mubr.bf16.gmra.mxu0 %v1461
        %v1556 = vpop.f32.mrf.mxu0
        %v1557 = vadd.f32 0.0, %v1556
        %v1558 = vpop.f32.mrf.mxu0
        %v1559 = vpop.f32.mrf.mxu0
        %v1560 = vadd.f32 0.0, %v1559
        %v1561 = vpop.f32.mrf.mxu0
        %1562 = vdwg.mxu0
        %v1563 = vadd.f32 %v1435, %v1501
        %v1564 = vadd.f32 %v1436, %v1504
        %v1565 = vadd.f32 %v1437, %v1509
        %v1566 = vadd.f32 %v1438, %v1512
        %v1567 = vadd.f32 %v1439, %v1517
        %v1568 = vadd.f32 %v1440, %v1520
        %v1569 = vadd.f32 %v1441, %v1525
        %v1570 = vadd.f32 %v1442, %v1528
        %v1571 = vadd.f32 %v1443, %v1533
        %v1572 = vadd.f32 %v1444, %v1536
        %v1573 = vadd.f32 %v1445, %v1541
        %v1574 = vadd.f32 %v1446, %v1544
        %v1575 = vadd.f32 %v1447, %v1549
        %v1576 = vadd.f32 %v1448, %v1552
        %v1577 = vadd.f32 %v1449, %v1557
        %v1578 = vadd.f32 %v1450, %v1560
        %v1579 = vld [vmem:[%s6 + $0x10] sm:$0xf]
        %v1580 = vsel %vm953, %v914, 0
        %v1582 = vsel %vm953, %v915, 0
        %v1584 = vsel %vm953, %v916, 0
        %v1586 = vsel %vm953, %v917, 0
        %v1588 = vsel %vm953, %v918, 0
        %v1590 = vsel %vm953, %v919, 0
        %v1592 = vsel %vm953, %v920, 0
        %v1594 = vsel %vm953, %v921, 0
        %v1597 = vsel %vm978, %v1579, 0
        %1599 = vmatprep.subr.bf16.mxu0 0
        %1600 = vmatpush1.bf16.msra.mxu0 0
        %1601 = vmatprep.subr.bf16.mxu0 0
        %1602 = vmatpush1.bf16.msra.mxu0 0
        %1603 = vmatprep.subr.bf16.mxu0 0
        %1604 = vmatpush1.bf16.msra.mxu0 0
        %1605 = vmatprep.subr.bf16.mxu0 0
        %1606 = vmatpush1.bf16.msra.mxu0 0
        %1607 = vmatprep.subr.bf16.mxu0 0
        %1608 = vmatpush1.bf16.msra.mxu0 0
        %1609 = vmatprep.subr.bf16.mxu0 0
        %1610 = vmatpush1.bf16.msra.mxu0 0
        %1611 = vmatprep.subr.bf16.mxu0 0
        %1612 = vmatpush1.bf16.msra.mxu0 0
        %1613 = vmatprep.subr.bf16.mxu0 0
        %1614 = vmatpush1.bf16.msra.mxu0 %v1597
        %1615 = vmatprep.subr.bf16.mxu0 0
        %1616 = vmatpush2.bf16.msra.mxu0 0
        %1617 = vmatprep.subr.bf16.mxu0 0
        %1618 = vmatpush2.bf16.msra.mxu0 0
        %1619 = vmatprep.subr.bf16.mxu0 0
        %1620 = vmatpush2.bf16.msra.mxu0 0
        %1621 = vmatprep.subr.bf16.mxu0 0
        %1622 = vmatpush2.bf16.msra.mxu0 0
        %1623 = vmatprep.subr.bf16.mxu0 0
        %1624 = vmatpush2.bf16.msra.mxu0 0
        %1625 = vmatprep.subr.bf16.mxu0 0
        %1626 = vmatpush2.bf16.msra.mxu0 0
        %1627 = vmatprep.subr.bf16.mxu0 0
        %1628 = vmatpush2.bf16.msra.mxu0 0
        %1629 = vmatprep.subr.bf16.mxu0 0
        %1630 = vmatpush2.bf16.msra.mxu0 0
        %1631 = vmatprep.mubr.bf16.mxu0 0
        %1632 = vmatmul.mubr.bf16.gmra.mxu0 %v1580
        %v1633 = vpop.f32.mrf.mxu0
        %v1634 = vadd.f32 0.0, %v1633
        %v1635 = vpop.f32.mrf.mxu0
        %v1636 = vpop.f32.mrf.mxu0
        %v1637 = vadd.f32 0.0, %v1636
        %v1638 = vpop.f32.mrf.mxu0
        %1639 = vmatprep.mubr.bf16.mxu0 0
        %1640 = vmatmul.mubr.bf16.gmra.mxu0 %v1582
        %v1641 = vpop.f32.mrf.mxu0
        %v1642 = vadd.f32 0.0, %v1641
        %v1643 = vpop.f32.mrf.mxu0
        %v1644 = vpop.f32.mrf.mxu0
        %v1645 = vadd.f32 0.0, %v1644
        %v1646 = vpop.f32.mrf.mxu0
        %1647 = vmatprep.mubr.bf16.mxu0 0
        %1648 = vmatmul.mubr.bf16.gmra.mxu0 %v1584
        %v1649 = vpop.f32.mrf.mxu0
        %v1650 = vadd.f32 0.0, %v1649
        %v1651 = vpop.f32.mrf.mxu0
        %v1652 = vpop.f32.mrf.mxu0
        %v1653 = vadd.f32 0.0, %v1652
        %v1654 = vpop.f32.mrf.mxu0
        %1655 = vmatprep.mubr.bf16.mxu0 0
        %1656 = vmatmul.mubr.bf16.gmra.mxu0 %v1586
        %v1657 = vpop.f32.mrf.mxu0
        %v1658 = vadd.f32 0.0, %v1657
        %v1659 = vpop.f32.mrf.mxu0
        %v1660 = vpop.f32.mrf.mxu0
        %v1661 = vadd.f32 0.0, %v1660
        %v1662 = vpop.f32.mrf.mxu0
        %1663 = vmatprep.mubr.bf16.mxu0 0
        %1664 = vmatmul.mubr.bf16.gmra.mxu0 %v1588
        %v1665 = vpop.f32.mrf.mxu0
        %v1666 = vadd.f32 0.0, %v1665
        %v1667 = vpop.f32.mrf.mxu0
        %v1668 = vpop.f32.mrf.mxu0
        %v1669 = vadd.f32 0.0, %v1668
        %v1670 = vpop.f32.mrf.mxu0
        %1671 = vmatprep.mubr.bf16.mxu0 0
        %1672 = vmatmul.mubr.bf16.gmra.mxu0 %v1590
        %v1673 = vpop.f32.mrf.mxu0
        %v1674 = vadd.f32 0.0, %v1673
        %v1675 = vpop.f32.mrf.mxu0
        %v1676 = vpop.f32.mrf.mxu0
        %v1677 = vadd.f32 0.0, %v1676
        %v1678 = vpop.f32.mrf.mxu0
        %1679 = vmatprep.mubr.bf16.mxu0 0
        %1680 = vmatmul.mubr.bf16.gmra.mxu0 %v1592
        %v1681 = vpop.f32.mrf.mxu0
        %v1682 = vadd.f32 0.0, %v1681
        %v1683 = vpop.f32.mrf.mxu0
        %v1684 = vpop.f32.mrf.mxu0
        %v1685 = vadd.f32 0.0, %v1684
        %v1686 = vpop.f32.mrf.mxu0
        %1687 = vmatprep.mubr.bf16.mxu0 0
        %1688 = vmatmul.mubr.bf16.gmra.mxu0 %v1594
        %v1689 = vpop.f32.mrf.mxu0
        %v1690 = vadd.f32 0.0, %v1689
        %v1691 = vpop.f32.mrf.mxu0
        %v1692 = vpop.f32.mrf.mxu0
        %v1693 = vadd.f32 0.0, %v1692
        %v1694 = vpop.f32.mrf.mxu0
        %1695 = vdwg.mxu0
        %v1696 = vadd.f32 %v1563, %v1634
        %v1697 = vadd.f32 %v1564, %v1637
        %v1698 = vadd.f32 %v1565, %v1642
        %v1699 = vadd.f32 %v1566, %v1645
        %v1700 = vadd.f32 %v1567, %v1650
        %v1701 = vadd.f32 %v1568, %v1653
        %v1702 = vadd.f32 %v1569, %v1658
        %v1703 = vadd.f32 %v1570, %v1661
        %v1704 = vadd.f32 %v1571, %v1666
        %v1705 = vadd.f32 %v1572, %v1669
        %v1706 = vadd.f32 %v1573, %v1674
        %v1707 = vadd.f32 %v1574, %v1677
        %v1708 = vadd.f32 %v1575, %v1682
        %v1709 = vadd.f32 %v1576, %v1685
        %v1710 = vadd.f32 %v1577, %v1690
        %v1711 = vadd.f32 %v1578, %v1693
        %v1712 = vld [vmem:[%s6 + $0x14] sm:$0xf]
        %vm1713 = vsmask.f32 7424
        %v1714 = vrot.slane %v1101, 1
        %v1715 = vor.u32 %v1098, %v1714
        %v1716 = vrot.slane %v1110, 1
        %v1717 = vsel %vm1713, %v1715, %v1716
        %v1718 = vor.u32 %v1107, %v1716
        %v1719 = vrot.slane %v1119, 1
        %v1720 = vsel %vm1713, %v1718, %v1719
        %v1721 = vor.u32 %v1116, %v1719
        %v1722 = vrot.slane %v1128, 1
        %v1723 = vsel %vm1713, %v1721, %v1722
        %v1724 = vor.u32 %v1125, %v1722
        %v1725 = vrot.slane %v1137, 1
        %v1726 = vsel %vm1713, %v1724, %v1725
        %v1727 = vor.u32 %v1134, %v1725
        %v1728 = vrot.slane %v1146, 1
        %v1729 = vsel %vm1713, %v1727, %v1728
        %v1730 = vor.u32 %v1143, %v1728
        %v1731 = vrot.slane %v1155, 1
        %v1732 = vsel %vm1713, %v1730, %v1731
        %v1733 = vor.u32 %v1152, %v1731
        %v1734 = vrot.slane %v1456, 1
        %v1735 = vsel %vm1713, %v1733, %v1734
        %v1736 = vor.u32 %v1453, %v1734
        %v1738 = vshll.u32 %v922, 16
        %v1740 = vrot.slane %v1738, 1
        %v1741 = vsel %vm1713, %v1736, %v1740
        %v1743 = vsel %vm953, %v1717, 0
        %v1746 = vsel %vm953, %v1720, 0
        %v1749 = vsel %vm953, %v1723, 0
        %v1752 = vsel %vm953, %v1726, 0
        %v1755 = vsel %vm953, %v1729, 0
        %v1758 = vsel %vm953, %v1732, 0
        %v1761 = vsel %vm953, %v1735, 0
        %v1764 = vsel %vm953, %v1741, 0
        %v1767 = vsel %vm978, %v1712, 0
        %1769 = vmatprep.subr.bf16.mxu0 0
        %1770 = vmatpush1.bf16.msra.mxu0 0
        %1771 = vmatprep.subr.bf16.mxu0 0
        %1772 = vmatpush1.bf16.msra.mxu0 0
        %1773 = vmatprep.subr.bf16.mxu0 0
        %1774 = vmatpush1.bf16.msra.mxu0 0
        %1775 = vmatprep.subr.bf16.mxu0 0
        %1776 = vmatpush1.bf16.msra.mxu0 0
        %1777 = vmatprep.subr.bf16.mxu0 0
        %1778 = vmatpush1.bf16.msra.mxu0 0
        %1779 = vmatprep.subr.bf16.mxu0 0
        %1780 = vmatpush1.bf16.msra.mxu0 0
        %1781 = vmatprep.subr.bf16.mxu0 0
        %1782 = vmatpush1.bf16.msra.mxu0 0
        %1783 = vmatprep.subr.bf16.mxu0 0
        %1784 = vmatpush1.bf16.msra.mxu0 %v1767
        %1785 = vmatprep.subr.bf16.mxu0 0
        %1786 = vmatpush2.bf16.msra.mxu0 0
        %1787 = vmatprep.subr.bf16.mxu0 0
        %1788 = vmatpush2.bf16.msra.mxu0 0
        %1789 = vmatprep.subr.bf16.mxu0 0
        %1790 = vmatpush2.bf16.msra.mxu0 0
        %1791 = vmatprep.subr.bf16.mxu0 0
        %1792 = vmatpush2.bf16.msra.mxu0 0
        %1793 = vmatprep.subr.bf16.mxu0 0
        %1794 = vmatpush2.bf16.msra.mxu0 0
        %1795 = vmatprep.subr.bf16.mxu0 0
        %1796 = vmatpush2.bf16.msra.mxu0 0
        %1797 = vmatprep.subr.bf16.mxu0 0
        %1798 = vmatpush2.bf16.msra.mxu0 0
        %1799 = vmatprep.subr.bf16.mxu0 0
        %1800 = vmatpush2.bf16.msra.mxu0 0
        %1801 = vmatprep.mubr.bf16.mxu0 0
        %1802 = vmatmul.mubr.bf16.gmra.mxu0 %v1743
        %v1803 = vpop.f32.mrf.mxu0
        %v1804 = vadd.f32 0.0, %v1803
        %v1805 = vpop.f32.mrf.mxu0
        %v1806 = vpop.f32.mrf.mxu0
        %v1807 = vadd.f32 0.0, %v1806
        %v1808 = vpop.f32.mrf.mxu0
        %1809 = vmatprep.mubr.bf16.mxu0 0
        %1810 = vmatmul.mubr.bf16.gmra.mxu0 %v1746
        %v1811 = vpop.f32.mrf.mxu0
        %v1812 = vadd.f32 0.0, %v1811
        %v1813 = vpop.f32.mrf.mxu0
        %v1814 = vpop.f32.mrf.mxu0
        %v1815 = vadd.f32 0.0, %v1814
        %v1816 = vpop.f32.mrf.mxu0
        %1817 = vmatprep.mubr.bf16.mxu0 0
        %1818 = vmatmul.mubr.bf16.gmra.mxu0 %v1749
        %v1819 = vpop.f32.mrf.mxu0
        %v1820 = vadd.f32 0.0, %v1819
        %v1821 = vpop.f32.mrf.mxu0
        %v1822 = vpop.f32.mrf.mxu0
        %v1823 = vadd.f32 0.0, %v1822
        %v1824 = vpop.f32.mrf.mxu0
        %1825 = vmatprep.mubr.bf16.mxu0 0
        %1826 = vmatmul.mubr.bf16.gmra.mxu0 %v1752
        %v1827 = vpop.f32.mrf.mxu0
        %v1828 = vadd.f32 0.0, %v1827
        %v1829 = vpop.f32.mrf.mxu0
        %v1830 = vpop.f32.mrf.mxu0
        %v1831 = vadd.f32 0.0, %v1830
        %v1832 = vpop.f32.mrf.mxu0
        %1833 = vmatprep.mubr.bf16.mxu0 0
        %1834 = vmatmul.mubr.bf16.gmra.mxu0 %v1755
        %v1835 = vpop.f32.mrf.mxu0
        %v1836 = vadd.f32 0.0, %v1835
        %v1837 = vpop.f32.mrf.mxu0
        %v1838 = vpop.f32.mrf.mxu0
        %v1839 = vadd.f32 0.0, %v1838
        %v1840 = vpop.f32.mrf.mxu0
        %1841 = vmatprep.mubr.bf16.mxu0 0
        %1842 = vmatmul.mubr.bf16.gmra.mxu0 %v1758
        %v1843 = vpop.f32.mrf.mxu0
        %v1844 = vadd.f32 0.0, %v1843
        %v1845 = vpop.f32.mrf.mxu0
        %v1846 = vpop.f32.mrf.mxu0
        %v1847 = vadd.f32 0.0, %v1846
        %v1848 = vpop.f32.mrf.mxu0
        %1849 = vmatprep.mubr.bf16.mxu0 0
        %1850 = vmatmul.mubr.bf16.gmra.mxu0 %v1761
        %v1851 = vpop.f32.mrf.mxu0
        %v1852 = vadd.f32 0.0, %v1851
        %v1853 = vpop.f32.mrf.mxu0
        %v1854 = vpop.f32.mrf.mxu0
        %v1855 = vadd.f32 0.0, %v1854
        %v1856 = vpop.f32.mrf.mxu0
        %1857 = vmatprep.mubr.bf16.mxu0 0
        %1858 = vmatmul.mubr.bf16.gmra.mxu0 %v1764
        %v1859 = vpop.f32.mrf.mxu0
        %v1860 = vadd.f32 0.0, %v1859
        %v1861 = vpop.f32.mrf.mxu0
        %v1862 = vpop.f32.mrf.mxu0
        %v1863 = vadd.f32 0.0, %v1862
        %v1864 = vpop.f32.mrf.mxu0
        %1865 = vdwg.mxu0
        %v1866 = vadd.f32 %v1696, %v1804
        %v1867 = vadd.f32 %v1697, %v1807
        %v1868 = vadd.f32 %v1698, %v1812
        %v1869 = vadd.f32 %v1699, %v1815
        %v1870 = vadd.f32 %v1700, %v1820
        %v1871 = vadd.f32 %v1701, %v1823
        %v1872 = vadd.f32 %v1702, %v1828
        %v1873 = vadd.f32 %v1703, %v1831
        %v1874 = vadd.f32 %v1704, %v1836
        %v1875 = vadd.f32 %v1705, %v1839
        %v1876 = vadd.f32 %v1706, %v1844
        %v1877 = vadd.f32 %v1707, %v1847
        %v1878 = vadd.f32 %v1708, %v1852
        %v1879 = vadd.f32 %v1709, %v1855
        %v1880 = vadd.f32 %v1710, %v1860
        %v1881 = vadd.f32 %v1711, %v1863
        %v1882 = vld [vmem:[%s6 + $0x18] sm:$0xf]
        %v1883 = vshrl.u32 %v922, 16
        %v1885 = vor.u32 %v1883, %v1740
        %v1887 = vshll.u32 %v923, 16
        %v1889 = vrot.slane %v1887, 1
        %v1890 = vsel %vm1713, %v1885, %v1889
        %v1892 = vsel %vm953, %v1890, 0
        %v1895 = vsel %vm978, %v1882, 0
        %1897 = vmatprep.subr.bf16.mxu0 0
        %1898 = vmatpush1.bf16.msra.mxu0 0
        %1899 = vmatprep.subr.bf16.mxu0 0
        %1900 = vmatpush1.bf16.msra.mxu0 0
        %1901 = vmatprep.subr.bf16.mxu0 0
        %1902 = vmatpush1.bf16.msra.mxu0 0
        %1903 = vmatprep.subr.bf16.mxu0 0
        %1904 = vmatpush1.bf16.msra.mxu0 0
        %1905 = vmatprep.subr.bf16.mxu0 0
        %1906 = vmatpush1.bf16.msra.mxu0 0
        %1907 = vmatprep.subr.bf16.mxu0 0
        %1908 = vmatpush1.bf16.msra.mxu0 0
        %1909 = vmatprep.subr.bf16.mxu0 0
        %1910 = vmatpush1.bf16.msra.mxu0 0
        %1911 = vmatprep.subr.bf16.mxu0 0
        %1912 = vmatpush1.bf16.msra.mxu0 %v1895
        %1913 = vmatprep.subr.bf16.mxu0 0
        %1914 = vmatpush2.bf16.msra.mxu0 0
        %1915 = vmatprep.subr.bf16.mxu0 0
        %1916 = vmatpush2.bf16.msra.mxu0 0
        %1917 = vmatprep.subr.bf16.mxu0 0
        %1918 = vmatpush2.bf16.msra.mxu0 0
        %1919 = vmatprep.subr.bf16.mxu0 0
        %1920 = vmatpush2.bf16.msra.mxu0 0
        %1921 = vmatprep.subr.bf16.mxu0 0
        %1922 = vmatpush2.bf16.msra.mxu0 0
        %1923 = vmatprep.subr.bf16.mxu0 0
        %1924 = vmatpush2.bf16.msra.mxu0 0
        %1925 = vmatprep.subr.bf16.mxu0 0
        %1926 = vmatpush2.bf16.msra.mxu0 0
        %1927 = vmatprep.subr.bf16.mxu0 0
        %1928 = vmatpush2.bf16.msra.mxu0 0
        %1929 = vmatprep.mubr.bf16.mxu0 0
        %1930 = vmatmul.mubr.bf16.gmra.mxu0 %v1746
        %v1931 = vpop.f32.mrf.mxu0
        %v1932 = vadd.f32 0.0, %v1931
        %v1933 = vpop.f32.mrf.mxu0
        %v1934 = vpop.f32.mrf.mxu0
        %v1935 = vadd.f32 0.0, %v1934
        %v1936 = vpop.f32.mrf.mxu0
        %1937 = vmatprep.mubr.bf16.mxu0 0
        %1938 = vmatmul.mubr.bf16.gmra.mxu0 %v1749
        %v1939 = vpop.f32.mrf.mxu0
        %v1940 = vadd.f32 0.0, %v1939
        %v1941 = vpop.f32.mrf.mxu0
        %v1942 = vpop.f32.mrf.mxu0
        %v1943 = vadd.f32 0.0, %v1942
        %v1944 = vpop.f32.mrf.mxu0
        %1945 = vmatprep.mubr.bf16.mxu0 0
        %1946 = vmatmul.mubr.bf16.gmra.mxu0 %v1752
        %v1947 = vpop.f32.mrf.mxu0
        %v1948 = vadd.f32 0.0, %v1947
        %v1949 = vpop.f32.mrf.mxu0
        %v1950 = vpop.f32.mrf.mxu0
        %v1951 = vadd.f32 0.0, %v1950
        %v1952 = vpop.f32.mrf.mxu0
        %1953 = vmatprep.mubr.bf16.mxu0 0
        %1954 = vmatmul.mubr.bf16.gmra.mxu0 %v1755
        %v1955 = vpop.f32.mrf.mxu0
        %v1956 = vadd.f32 0.0, %v1955
        %v1957 = vpop.f32.mrf.mxu0
        %v1958 = vpop.f32.mrf.mxu0
        %v1959 = vadd.f32 0.0, %v1958
        %v1960 = vpop.f32.mrf.mxu0
        %1961 = vmatprep.mubr.bf16.mxu0 0
        %1962 = vmatmul.mubr.bf16.gmra.mxu0 %v1758
        %v1963 = vpop.f32.mrf.mxu0
        %v1964 = vadd.f32 0.0, %v1963
        %v1965 = vpop.f32.mrf.mxu0
        %v1966 = vpop.f32.mrf.mxu0
        %v1967 = vadd.f32 0.0, %v1966
        %v1968 = vpop.f32.mrf.mxu0
        %1969 = vmatprep.mubr.bf16.mxu0 0
        %1970 = vmatmul.mubr.bf16.gmra.mxu0 %v1761
        %v1971 = vpop.f32.mrf.mxu0
        %v1972 = vadd.f32 0.0, %v1971
        %v1973 = vpop.f32.mrf.mxu0
        %v1974 = vpop.f32.mrf.mxu0
        %v1975 = vadd.f32 0.0, %v1974
        %v1976 = vpop.f32.mrf.mxu0
        %1977 = vmatprep.mubr.bf16.mxu0 0
        %1978 = vmatmul.mubr.bf16.gmra.mxu0 %v1764
        %v1979 = vpop.f32.mrf.mxu0
        %v1980 = vadd.f32 0.0, %v1979
        %v1981 = vpop.f32.mrf.mxu0
        %v1982 = vpop.f32.mrf.mxu0
        %v1983 = vadd.f32 0.0, %v1982
        %v1984 = vpop.f32.mrf.mxu0
        %1985 = vmatprep.mubr.bf16.mxu0 0
        %1986 = vmatmul.mubr.bf16.gmra.mxu0 %v1892
        %v1987 = vpop.f32.mrf.mxu0
        %v1988 = vadd.f32 0.0, %v1987
        %v1989 = vpop.f32.mrf.mxu0
        %v1990 = vpop.f32.mrf.mxu0
        %v1991 = vadd.f32 0.0, %v1990
        %v1992 = vpop.f32.mrf.mxu0
        %1993 = vdwg.mxu0
        %v1994 = vadd.f32 %v1866, %v1932
        %v1995 = vadd.f32 %v1867, %v1935
        %v1996 = vadd.f32 %v1868, %v1940
        %v1997 = vadd.f32 %v1869, %v1943
        %v1998 = vadd.f32 %v1870, %v1948
        %v1999 = vadd.f32 %v1871, %v1951
        %v2000 = vadd.f32 %v1872, %v1956
        %v2001 = vadd.f32 %v1873, %v1959
        %v2002 = vadd.f32 %v1874, %v1964
        %v2003 = vadd.f32 %v1875, %v1967
        %v2004 = vadd.f32 %v1876, %v1972
        %v2005 = vadd.f32 %v1877, %v1975
        %v2006 = vadd.f32 %v1878, %v1980
        %v2007 = vadd.f32 %v1879, %v1983
        %v2008 = vadd.f32 %v1880, %v1988
        %v2009 = vadd.f32 %v1881, %v1991
        %v2010 = vld [vmem:[%s6 + $0x1c] sm:$0xf]
        %vm2014 = vcmask 1046528
        %v2015 = vrot.slane %v915, 1
        %v2016 = vrot.slane %v916, 1
        %v2017 = vsel %vm2014, %v2015, %v2016
        %v2018 = vrot.slane %v917, 1
        %v2019 = vsel %vm2014, %v2016, %v2018
        %v2020 = vrot.slane %v918, 1
        %v2021 = vsel %vm2014, %v2018, %v2020
        %v2022 = vrot.slane %v919, 1
        %v2023 = vsel %vm2014, %v2020, %v2022
        %v2024 = vrot.slane %v920, 1
        %v2025 = vsel %vm2014, %v2022, %v2024
        %v2026 = vrot.slane %v921, 1
        %v2027 = vsel %vm2014, %v2024, %v2026
        %v2028 = vrot.slane %v922, 1
        %v2029 = vsel %vm2014, %v2026, %v2028
        %v2030 = vrot.slane %v923, 1
        %v2031 = vsel %vm2014, %v2028, %v2030
        %v2033 = vsel %vm953, %v2017, 0
        %v2036 = vsel %vm953, %v2019, 0
        %v2039 = vsel %vm953, %v2021, 0
        %v2042 = vsel %vm953, %v2023, 0
        %v2045 = vsel %vm953, %v2025, 0
        %v2048 = vsel %vm953, %v2027, 0
        %v2051 = vsel %vm953, %v2029, 0
        %v2054 = vsel %vm953, %v2031, 0
        %v2057 = vsel %vm978, %v2010, 0
        %2059 = vmatprep.subr.bf16.mxu0 0
        %2060 = vmatpush1.bf16.msra.mxu0 0
        %2061 = vmatprep.subr.bf16.mxu0 0
        %2062 = vmatpush1.bf16.msra.mxu0 0
        %2063 = vmatprep.subr.bf16.mxu0 0
        %2064 = vmatpush1.bf16.msra.mxu0 0
        %2065 = vmatprep.subr.bf16.mxu0 0
        %2066 = vmatpush1.bf16.msra.mxu0 0
        %2067 = vmatprep.subr.bf16.mxu0 0
        %2068 = vmatpush1.bf16.msra.mxu0 0
        %2069 = vmatprep.subr.bf16.mxu0 0
        %2070 = vmatpush1.bf16.msra.mxu0 0
        %2071 = vmatprep.subr.bf16.mxu0 0
        %2072 = vmatpush1.bf16.msra.mxu0 0
        %2073 = vmatprep.subr.bf16.mxu0 0
        %2074 = vmatpush1.bf16.msra.mxu0 %v2057
        %2075 = vmatprep.subr.bf16.mxu0 0
        %2076 = vmatpush2.bf16.msra.mxu0 0
        %2077 = vmatprep.subr.bf16.mxu0 0
        %2078 = vmatpush2.bf16.msra.mxu0 0
        %2079 = vmatprep.subr.bf16.mxu0 0
        %2080 = vmatpush2.bf16.msra.mxu0 0
        %2081 = vmatprep.subr.bf16.mxu0 0
        %2082 = vmatpush2.bf16.msra.mxu0 0
        %2083 = vmatprep.subr.bf16.mxu0 0
        %2084 = vmatpush2.bf16.msra.mxu0 0
        %2085 = vmatprep.subr.bf16.mxu0 0
        %2086 = vmatpush2.bf16.msra.mxu0 0
        %2087 = vmatprep.subr.bf16.mxu0 0
        %2088 = vmatpush2.bf16.msra.mxu0 0
        %2089 = vmatprep.subr.bf16.mxu0 0
        %2090 = vmatpush2.bf16.msra.mxu0 0
        %2091 = vmatprep.mubr.bf16.mxu0 0
        %2092 = vmatmul.mubr.bf16.gmra.mxu0 %v2033
        %v2093 = vpop.f32.mrf.mxu0
        %v2094 = vadd.f32 0.0, %v2093
        %v2095 = vpop.f32.mrf.mxu0
        %v2096 = vpop.f32.mrf.mxu0
        %v2097 = vadd.f32 0.0, %v2096
        %v2098 = vpop.f32.mrf.mxu0
        %2099 = vmatprep.mubr.bf16.mxu0 0
        %2100 = vmatmul.mubr.bf16.gmra.mxu0 %v2036
        %v2101 = vpop.f32.mrf.mxu0
        %v2102 = vadd.f32 0.0, %v2101
        %v2103 = vpop.f32.mrf.mxu0
        %v2104 = vpop.f32.mrf.mxu0
        %v2105 = vadd.f32 0.0, %v2104
        %v2106 = vpop.f32.mrf.mxu0
        %2107 = vmatprep.mubr.bf16.mxu0 0
        %2108 = vmatmul.mubr.bf16.gmra.mxu0 %v2039
        %v2109 = vpop.f32.mrf.mxu0
        %v2110 = vadd.f32 0.0, %v2109
        %v2111 = vpop.f32.mrf.mxu0
        %v2112 = vpop.f32.mrf.mxu0
        %v2113 = vadd.f32 0.0, %v2112
        %v2114 = vpop.f32.mrf.mxu0
        %2115 = vmatprep.mubr.bf16.mxu0 0
        %2116 = vmatmul.mubr.bf16.gmra.mxu0 %v2042
        %v2117 = vpop.f32.mrf.mxu0
        %v2118 = vadd.f32 0.0, %v2117
        %v2119 = vpop.f32.mrf.mxu0
        %v2120 = vpop.f32.mrf.mxu0
        %v2121 = vadd.f32 0.0, %v2120
        %v2122 = vpop.f32.mrf.mxu0
        %2123 = vmatprep.mubr.bf16.mxu0 0
        %2124 = vmatmul.mubr.bf16.gmra.mxu0 %v2045
        %v2125 = vpop.f32.mrf.mxu0
        %v2126 = vadd.f32 0.0, %v2125
        %v2127 = vpop.f32.mrf.mxu0
        %v2128 = vpop.f32.mrf.mxu0
        %v2129 = vadd.f32 0.0, %v2128
        %v2130 = vpop.f32.mrf.mxu0
        %2131 = vmatprep.mubr.bf16.mxu0 0
        %2132 = vmatmul.mubr.bf16.gmra.mxu0 %v2048
        %v2133 = vpop.f32.mrf.mxu0
        %v2134 = vadd.f32 0.0, %v2133
        %v2135 = vpop.f32.mrf.mxu0
        %v2136 = vpop.f32.mrf.mxu0
        %v2137 = vadd.f32 0.0, %v2136
        %v2138 = vpop.f32.mrf.mxu0
        %2139 = vmatprep.mubr.bf16.mxu0 0
        %2140 = vmatmul.mubr.bf16.gmra.mxu0 %v2051
        %v2141 = vpop.f32.mrf.mxu0
        %v2142 = vadd.f32 0.0, %v2141
        %v2143 = vpop.f32.mrf.mxu0
        %v2144 = vpop.f32.mrf.mxu0
        %v2145 = vadd.f32 0.0, %v2144
        %v2146 = vpop.f32.mrf.mxu0
        %2147 = vmatprep.mubr.bf16.mxu0 0
        %2148 = vmatmul.mubr.bf16.gmra.mxu0 %v2054
        %v2149 = vpop.f32.mrf.mxu0
        %v2150 = vadd.f32 0.0, %v2149
        %v2151 = vpop.f32.mrf.mxu0
        %v2152 = vpop.f32.mrf.mxu0
        %v2153 = vadd.f32 0.0, %v2152
        %v2154 = vpop.f32.mrf.mxu0
        %2155 = vdwg.mxu0
        %v2156 = vadd.f32 %v1994, %v2094
        %v2157 = vadd.f32 %v1995, %v2097
        %v2158 = vadd.f32 %v1996, %v2102
        %v2159 = vadd.f32 %v1997, %v2105
        %v2160 = vadd.f32 %v1998, %v2110
        %v2161 = vadd.f32 %v1999, %v2113
        %v2162 = vadd.f32 %v2000, %v2118
        %v2163 = vadd.f32 %v2001, %v2121
        %v2164 = vadd.f32 %v2002, %v2126
        %v2165 = vadd.f32 %v2003, %v2129
        %v2166 = vadd.f32 %v2004, %v2134
        %v2167 = vadd.f32 %v2005, %v2137
        %v2168 = vadd.f32 %v2006, %v2142
        %v2169 = vadd.f32 %v2007, %v2145
        %v2170 = vadd.f32 %v2008, %v2150
        %v2171 = vadd.f32 %v2009, %v2153
        %v2172 = vld [vmem:[%s6 + $0x20] sm:$0xf]
        %vm2173 = vsmask.f32 6400
        %v2174 = vrot.slane %v1107, 1
        %v2175 = vrot.slane %v1110, 2
        %v2176 = vor.u32 %v2174, %v2175
        %v2177 = vrot.slane %v1116, 1
        %v2178 = vrot.slane %v1119, 2
        %v2179 = vor.u32 %v2177, %v2178
        %v2180 = vsel %vm2173, %v2176, %v2179
        %v2181 = vrot.slane %v1125, 1
        %v2182 = vrot.slane %v1128, 2
        %v2183 = vor.u32 %v2181, %v2182
        %v2184 = vsel %vm2173, %v2179, %v2183
        %v2185 = vrot.slane %v1134, 1
        %v2186 = vrot.slane %v1137, 2
        %v2187 = vor.u32 %v2185, %v2186
        %v2188 = vsel %vm2173, %v2183, %v2187
        %v2189 = vrot.slane %v1143, 1
        %v2190 = vrot.slane %v1146, 2
        %v2191 = vor.u32 %v2189, %v2190
        %v2192 = vsel %vm2173, %v2187, %v2191
        %v2193 = vrot.slane %v1152, 1
        %v2194 = vrot.slane %v1155, 2
        %v2195 = vor.u32 %v2193, %v2194
        %v2196 = vsel %vm2173, %v2191, %v2195
        %v2197 = vrot.slane %v1453, 1
        %v2198 = vrot.slane %v1456, 2
        %v2199 = vor.u32 %v2197, %v2198
        %v2200 = vsel %vm2173, %v2195, %v2199
        %v2201 = vrot.slane %v1883, 1
        %v2202 = vrot.slane %v1738, 2
        %v2203 = vor.u32 %v2201, %v2202
        %v2204 = vsel %vm2173, %v2199, %v2203
        %v2205 = vshrl.u32 %v923, 16
        %v2207 = vrot.slane %v2205, 1
        %v2208 = vrot.slane %v1887, 2
        %v2209 = vor.u32 %v2207, %v2208
        %v2210 = vsel %vm2173, %v2203, %v2209
        %v2212 = vsel %vm953, %v2180, 0
        %v2215 = vsel %vm953, %v2184, 0
        %v2218 = vsel %vm953, %v2188, 0
        %v2221 = vsel %vm953, %v2192, 0
        %v2224 = vsel %vm953, %v2196, 0
        %v2227 = vsel %vm953, %v2200, 0
        %v2230 = vsel %vm953, %v2204, 0
        %v2233 = vsel %vm953, %v2210, 0
        %v2236 = vsel %vm978, %v2172, 0
        %2238 = vmatprep.subr.bf16.mxu0 0
        %2239 = vmatpush1.bf16.msra.mxu0 0
        %2240 = vmatprep.subr.bf16.mxu0 0
        %2241 = vmatpush1.bf16.msra.mxu0 0
        %2242 = vmatprep.subr.bf16.mxu0 0
        %2243 = vmatpush1.bf16.msra.mxu0 0
        %2244 = vmatprep.subr.bf16.mxu0 0
        %2245 = vmatpush1.bf16.msra.mxu0 0
        %2246 = vmatprep.subr.bf16.mxu0 0
        %2247 = vmatpush1.bf16.msra.mxu0 0
        %2248 = vmatprep.subr.bf16.mxu0 0
        %2249 = vmatpush1.bf16.msra.mxu0 0
        %2250 = vmatprep.subr.bf16.mxu0 0
        %2251 = vmatpush1.bf16.msra.mxu0 0
        %2252 = vmatprep.subr.bf16.mxu0 0
        %2253 = vmatpush1.bf16.msra.mxu0 %v2236
        %2254 = vmatprep.subr.bf16.mxu0 0
        %2255 = vmatpush2.bf16.msra.mxu0 0
        %2256 = vmatprep.subr.bf16.mxu0 0
        %2257 = vmatpush2.bf16.msra.mxu0 0
        %2258 = vmatprep.subr.bf16.mxu0 0
        %2259 = vmatpush2.bf16.msra.mxu0 0
        %2260 = vmatprep.subr.bf16.mxu0 0
        %2261 = vmatpush2.bf16.msra.mxu0 0
        %2262 = vmatprep.subr.bf16.mxu0 0
        %2263 = vmatpush2.bf16.msra.mxu0 0
        %2264 = vmatprep.subr.bf16.mxu0 0
        %2265 = vmatpush2.bf16.msra.mxu0 0
        %2266 = vmatprep.subr.bf16.mxu0 0
        %2267 = vmatpush2.bf16.msra.mxu0 0
        %2268 = vmatprep.subr.bf16.mxu0 0
        %2269 = vmatpush2.bf16.msra.mxu0 0
        %2270 = vmatprep.mubr.bf16.mxu0 0
        %2271 = vmatmul.mubr.bf16.gmra.mxu0 %v2212
        %v2272 = vpop.f32.mrf.mxu0
        %v2273 = vadd.f32 0.0, %v2272
        %v2274 = vpop.f32.mrf.mxu0
        %v2275 = vpop.f32.mrf.mxu0
        %v2276 = vadd.f32 0.0, %v2275
        %v2277 = vpop.f32.mrf.mxu0
        %2278 = vmatprep.mubr.bf16.mxu0 0
        %2279 = vmatmul.mubr.bf16.gmra.mxu0 %v2215
        %v2280 = vpop.f32.mrf.mxu0
        %v2281 = vadd.f32 0.0, %v2280
        %v2282 = vpop.f32.mrf.mxu0
        %v2283 = vpop.f32.mrf.mxu0
        %v2284 = vadd.f32 0.0, %v2283
        %v2285 = vpop.f32.mrf.mxu0
        %2286 = vmatprep.mubr.bf16.mxu0 0
        %2287 = vmatmul.mubr.bf16.gmra.mxu0 %v2218
        %v2288 = vpop.f32.mrf.mxu0
        %v2289 = vadd.f32 0.0, %v2288
        %v2290 = vpop.f32.mrf.mxu0
        %v2291 = vpop.f32.mrf.mxu0
        %v2292 = vadd.f32 0.0, %v2291
        %v2293 = vpop.f32.mrf.mxu0
        %2294 = vmatprep.mubr.bf16.mxu0 0
        %2295 = vmatmul.mubr.bf16.gmra.mxu0 %v2221
        %v2296 = vpop.f32.mrf.mxu0
        %v2297 = vadd.f32 0.0, %v2296
        %v2298 = vpop.f32.mrf.mxu0
        %v2299 = vpop.f32.mrf.mxu0
        %v2300 = vadd.f32 0.0, %v2299
        %v2301 = vpop.f32.mrf.mxu0
        %2302 = vmatprep.mubr.bf16.mxu0 0
        %2303 = vmatmul.mubr.bf16.gmra.mxu0 %v2224
        %v2304 = vpop.f32.mrf.mxu0
        %v2305 = vadd.f32 0.0, %v2304
        %v2306 = vpop.f32.mrf.mxu0
        %v2307 = vpop.f32.mrf.mxu0
        %v2308 = vadd.f32 0.0, %v2307
        %v2309 = vpop.f32.mrf.mxu0
        %2310 = vmatprep.mubr.bf16.mxu0 0
        %2311 = vmatmul.mubr.bf16.gmra.mxu0 %v2227
        %v2312 = vpop.f32.mrf.mxu0
        %v2313 = vadd.f32 0.0, %v2312
        %v2314 = vpop.f32.mrf.mxu0
        %v2315 = vpop.f32.mrf.mxu0
        %v2316 = vadd.f32 0.0, %v2315
        %v2317 = vpop.f32.mrf.mxu0
        %2318 = vmatprep.mubr.bf16.mxu0 0
        %2319 = vmatmul.mubr.bf16.gmra.mxu0 %v2230
        %v2320 = vpop.f32.mrf.mxu0
        %v2321 = vadd.f32 0.0, %v2320
        %v2322 = vpop.f32.mrf.mxu0
        %v2323 = vpop.f32.mrf.mxu0
        %v2324 = vadd.f32 0.0, %v2323
        %v2325 = vpop.f32.mrf.mxu0
        %2326 = vmatprep.mubr.bf16.mxu0 0
        %2327 = vmatmul.mubr.bf16.gmra.mxu0 %v2233
        %v2328 = vpop.f32.mrf.mxu0
        %v2329 = vadd.f32 0.0, %v2328
        %v2330 = vpop.f32.mrf.mxu0
        %v2331 = vpop.f32.mrf.mxu0
        %v2332 = vadd.f32 0.0, %v2331
        %v2333 = vpop.f32.mrf.mxu0
        %2334 = vdwg.mxu0
        %v2335 = vadd.f32 %v2156, %v2273
        %v2336 = vadd.f32 %v2157, %v2276
        %v2337 = vadd.f32 %v2158, %v2281
        %v2338 = vadd.f32 %v2159, %v2284
        %v2339 = vadd.f32 %v2160, %v2289
        %v2340 = vadd.f32 %v2161, %v2292
        %v2341 = vadd.f32 %v2162, %v2297
        %v2342 = vadd.f32 %v2163, %v2300
        %v2343 = vadd.f32 %v2164, %v2305
        %v2344 = vadd.f32 %v2165, %v2308
        %v2345 = vadd.f32 %v2166, %v2313
        %v2346 = vadd.f32 %v2167, %v2316
        %v2347 = vadd.f32 %v2168, %v2321
        %v2348 = vadd.f32 %v2169, %v2324
        %v2349 = vadd.f32 %v2170, %v2329
        %v2350 = vadd.f32 %v2171, %v2332
        %v2351 = vpack.c.bf16 %v2336, %v2335
        %v2352 = vpack.c.bf16 %v2338, %v2337
        %v2353 = vpack.c.bf16 %v2340, %v2339
        %v2354 = vpack.c.bf16 %v2342, %v2341
        %v2355 = vpack.c.bf16 %v2344, %v2343
        %v2356 = vpack.c.bf16 %v2346, %v2345
        %v2357 = vpack.c.bf16 %v2348, %v2347
        %v2358 = vpack.c.bf16 %v2350, %v2349
        %v2367 = vunpack.c.l.b16 %v2351
        %v2368 = vunpack.c.h.b16 %v2351
        %v2369 = vunpack.c.l.b16 %v2352
        %v2370 = vunpack.c.h.b16 %v2352
        %v2371 = vunpack.c.l.b16 %v2353
        %v2372 = vunpack.c.h.b16 %v2353
        %v2373 = vunpack.c.l.b16 %v2354
        %v2374 = vunpack.c.h.b16 %v2354
        %v2375 = vunpack.c.l.b16 %v2355
        %v2376 = vunpack.c.h.b16 %v2355
        %v2377 = vunpack.c.l.b16 %v2356
        %v2378 = vunpack.c.h.b16 %v2356
        %v2379 = vunpack.c.l.b16 %v2357
        %v2380 = vunpack.c.h.b16 %v2357
        %v2381 = vunpack.c.l.b16 %v2358
        %v2382 = vunpack.c.h.b16 %v2358
        %v2383 = vpack.c.b16 %v2367, %v2367
        %v2384 = vpack.c.b16 %v2368, %v2368
        %v2385 = vpack.c.b16 %v2369, %v2369
        %v2386 = vpack.c.b16 %v2370, %v2370
        %v2387 = vpack.c.b16 %v2371, %v2371
        %v2388 = vpack.c.b16 %v2372, %v2372
        %v2389 = vpack.c.b16 %v2373, %v2373
        %v2390 = vpack.c.b16 %v2374, %v2374
        %v2391 = vpack.c.b16 %v2375, %v2375
        %v2392 = vpack.c.b16 %v2376, %v2376
        %v2393 = vpack.c.b16 %v2377, %v2377
        %v2394 = vpack.c.b16 %v2378, %v2378
        %v2395 = vpack.c.b16 %v2379, %v2379
        %v2396 = vpack.c.b16 %v2380, %v2380
        %v2397 = vpack.c.b16 %v2381, %v2381
        %v2398 = vpack.c.b16 %v2382, %v2382
        %vm2415 = vcmask 519168
        %2416 = vst.msk [vmem:[%s547] sm:$0xf] %vm2415, %v2383
        %2417 = vst.msk [vmem:[%s547 + $0x4] sm:$0xf] %vm2415, %v2384
        %2418 = vst.msk [vmem:[%s547 + $0x8] sm:$0xf] %vm2415, %v2385
        %2419 = vst.msk [vmem:[%s547 + $0xc] sm:$0xf] %vm2415, %v2386
        %2420 = vst.msk [vmem:[%s547 + $0x10] sm:$0xf] %vm2415, %v2387
        %2421 = vst.msk [vmem:[%s547 + $0x14] sm:$0xf] %vm2415, %v2388
        %2422 = vst.msk [vmem:[%s547 + $0x18] sm:$0xf] %vm2415, %v2389
        %2423 = vst.msk [vmem:[%s547 + $0x1c] sm:$0xf] %vm2415, %v2390
        %2424 = vst.msk [vmem:[%s547 + $0x20] sm:$0xf] %vm2415, %v2391
        %2425 = vst.msk [vmem:[%s547 + $0x24] sm:$0xf] %vm2415, %v2392
        %2426 = vst.msk [vmem:[%s547 + $0x28] sm:$0xf] %vm2415, %v2393
        %2427 = vst.msk [vmem:[%s547 + $0x2c] sm:$0xf] %vm2415, %v2394
        %2428 = vst.msk [vmem:[%s547 + $0x30] sm:$0xf] %vm2415, %v2395
        %2429 = vst.msk [vmem:[%s547 + $0x34] sm:$0xf] %vm2415, %v2396
        %2430 = vst.msk [vmem:[%s547 + $0x38] sm:$0xf] %vm2415, %v2397
        %2431 = vst.msk [vmem:[%s547 + $0x3c] sm:$0xf] %vm2415, %v2398
        %v2432 = vld [vmem:[%s529] sm:$0xff]
        %v2433 = vld [vmem:[%s529 + $0x8] sm:$0xff]
        %v2434 = vld [vmem:[%s529 + $0x10] sm:$0xff]
        %v2435 = vld [vmem:[%s529 + $0x18] sm:$0xff]
        %v2436 = vld [vmem:[%s529 + $0x20] sm:$0xff]
        %v2437 = vld [vmem:[%s529 + $0x28] sm:$0xff]
        %v2438 = vld [vmem:[%s529 + $0x30] sm:$0xff]
        %v2439 = vld [vmem:[%s529 + $0x38] sm:$0xff]
        %v2440 = vld [vmem:[%s529 + $0x40] sm:$0xff]
        %v2441 = vld [vmem:[%s529 + $0x48] sm:$0xff]
        %v2442 = vld [vmem:[%s529 + $0x50] sm:$0xff]
        %v2443 = vld [vmem:[%s529 + $0x58] sm:$0xff]
        %v2444 = vld [vmem:[%s529 + $0x60] sm:$0xff]
        %v2445 = vld [vmem:[%s529 + $0x68] sm:$0xff]
        %v2446 = vld [vmem:[%s529 + $0x70] sm:$0xff]
        %v2447 = vld [vmem:[%s529 + $0x78] sm:$0xff]
        %vm2448 = vcmp.gt.f32.partialorder %v2432, 0.5
        %vm2449 = vcmp.gt.f32.partialorder %v2433, 0.5
        %vm2450 = vcmp.gt.f32.partialorder %v2434, 0.5
        %vm2451 = vcmp.gt.f32.partialorder %v2435, 0.5
        %vm2452 = vcmp.gt.f32.partialorder %v2436, 0.5
        %vm2453 = vcmp.gt.f32.partialorder %v2437, 0.5
        %vm2454 = vcmp.gt.f32.partialorder %v2438, 0.5
        %vm2455 = vcmp.gt.f32.partialorder %v2439, 0.5
        %vm2456 = vcmp.gt.f32.partialorder %v2440, 0.5
        %vm2457 = vcmp.gt.f32.partialorder %v2441, 0.5
        %vm2458 = vcmp.gt.f32.partialorder %v2442, 0.5
        %vm2459 = vcmp.gt.f32.partialorder %v2443, 0.5
        %vm2460 = vcmp.gt.f32.partialorder %v2444, 0.5
        %vm2461 = vcmp.gt.f32.partialorder %v2445, 0.5
        %vm2462 = vcmp.gt.f32.partialorder %v2446, 0.5
        %vm2463 = vcmp.gt.f32.partialorder %v2447, 0.5
        %v2464 = vsel %vm2448, 1, 0
        %v2465 = vsel %vm2449, 1, 0
        %v2466 = vsel %vm2450, 1, 0
        %v2467 = vsel %vm2451, 1, 0
        %v2468 = vsel %vm2452, 1, 0
        %v2469 = vsel %vm2453, 1, 0
        %v2470 = vsel %vm2454, 1, 0
        %v2471 = vsel %vm2455, 1, 0
        %v2472 = vsel %vm2456, 1, 0
        %v2473 = vsel %vm2457, 1, 0
        %v2474 = vsel %vm2458, 1, 0
        %v2475 = vsel %vm2459, 1, 0
        %v2476 = vsel %vm2460, 1, 0
        %v2477 = vsel %vm2461, 1, 0
        %v2478 = vsel %vm2462, 1, 0
        %v2479 = vsel %vm2463, 1, 0
        %2480 = vset.pattern.permute.xlu0 0
        %2481 = vperm.xlu0 %2480, %v2464
        %v2482 = vpop.permute.xlu0 %2481
        %2483 = vset.pattern.permute.xlu0 0
        %2484 = vperm.xlu0 %2483, %v2465
        %v2485 = vpop.permute.xlu0 %2484
        %2486 = vset.pattern.permute.xlu0 0
        %2487 = vperm.xlu0 %2486, %v2466
        %v2488 = vpop.permute.xlu0 %2487
        %2489 = vset.pattern.permute.xlu0 0
        %2490 = vperm.xlu0 %2489, %v2467
        %v2491 = vpop.permute.xlu0 %2490
        %2492 = vset.pattern.permute.xlu0 0
        %2493 = vperm.xlu0 %2492, %v2468
        %v2494 = vpop.permute.xlu0 %2493
        %2495 = vset.pattern.permute.xlu0 0
        %2496 = vperm.xlu0 %2495, %v2469
        %v2497 = vpop.permute.xlu0 %2496
        %2498 = vset.pattern.permute.xlu0 0
        %2499 = vperm.xlu0 %2498, %v2470
        %v2500 = vpop.permute.xlu0 %2499
        %2501 = vset.pattern.permute.xlu0 0
        %2502 = vperm.xlu0 %2501, %v2471
        %v2503 = vpop.permute.xlu0 %2502
        %2504 = vset.pattern.permute.xlu0 0
        %2505 = vperm.xlu0 %2504, %v2472
        %v2506 = vpop.permute.xlu0 %2505
        %2507 = vset.pattern.permute.xlu0 0
        %2508 = vperm.xlu0 %2507, %v2473
        %v2509 = vpop.permute.xlu0 %2508
        %2510 = vset.pattern.permute.xlu0 0
        %2511 = vperm.xlu0 %2510, %v2474
        %v2512 = vpop.permute.xlu0 %2511
        %2513 = vset.pattern.permute.xlu0 0
        %2514 = vperm.xlu0 %2513, %v2475
        %v2515 = vpop.permute.xlu0 %2514
        %2516 = vset.pattern.permute.xlu0 0
        %2517 = vperm.xlu0 %2516, %v2476
        %v2518 = vpop.permute.xlu0 %2517
        %2519 = vset.pattern.permute.xlu0 0
        %2520 = vperm.xlu0 %2519, %v2477
        %v2521 = vpop.permute.xlu0 %2520
        %2522 = vset.pattern.permute.xlu0 0
        %2523 = vperm.xlu0 %2522, %v2478
        %v2524 = vpop.permute.xlu0 %2523
        %2525 = vset.pattern.permute.xlu0 0
        %2526 = vperm.xlu0 %2525, %v2479
        %v2527 = vpop.permute.xlu0 %2526
        %vm2528 = vcmp.eq.s32.totalorder %v2482, 1
        %vm2529 = vcmp.eq.s32.totalorder %v2485, 1
        %vm2530 = vcmp.eq.s32.totalorder %v2488, 1
        %vm2531 = vcmp.eq.s32.totalorder %v2491, 1
        %vm2532 = vcmp.eq.s32.totalorder %v2494, 1
        %vm2533 = vcmp.eq.s32.totalorder %v2497, 1
        %vm2534 = vcmp.eq.s32.totalorder %v2500, 1
        %vm2535 = vcmp.eq.s32.totalorder %v2503, 1
        %vm2536 = vcmp.eq.s32.totalorder %v2506, 1
        %vm2537 = vcmp.eq.s32.totalorder %v2509, 1
        %vm2538 = vcmp.eq.s32.totalorder %v2512, 1
        %vm2539 = vcmp.eq.s32.totalorder %v2515, 1
        %vm2540 = vcmp.eq.s32.totalorder %v2518, 1
        %vm2541 = vcmp.eq.s32.totalorder %v2521, 1
        %vm2542 = vcmp.eq.s32.totalorder %v2524, 1
        %vm2543 = vcmp.eq.s32.totalorder %v2527, 1
        %v2544 = vsel %vm2528, %v2335, 0.0
        %v2545 = vsel %vm2529, %v2336, 0.0
        %v2546 = vsel %vm2530, %v2337, 0.0
        %v2547 = vsel %vm2531, %v2338, 0.0
        %v2548 = vsel %vm2532, %v2339, 0.0
        %v2549 = vsel %vm2533, %v2340, 0.0
        %v2550 = vsel %vm2534, %v2341, 0.0
        %v2551 = vsel %vm2535, %v2342, 0.0
        %v2552 = vsel %vm2536, %v2343, 0.0
        %v2553 = vsel %vm2537, %v2344, 0.0
        %v2554 = vsel %vm2538, %v2345, 0.0
        %v2555 = vsel %vm2539, %v2346, 0.0
        %v2556 = vsel %vm2540, %v2347, 0.0
        %v2557 = vsel %vm2541, %v2348, 0.0
        %v2558 = vsel %vm2542, %v2349, 0.0
        %v2559 = vsel %vm2543, %v2350, 0.0
        %vm2560 = vcmask 523264
        %v2561 = vsel %vm2560, %v2544, 0.0
        %v2562 = vsel %vm2560, %v2545, 0.0
        %v2563 = vadd.f32 %v2561, %v2562
        %v2564 = vsel %vm2560, %v2546, 0.0
        %v2565 = vadd.f32 %v2563, %v2564
        %v2566 = vsel %vm2560, %v2547, 0.0
        %v2567 = vadd.f32 %v2565, %v2566
        %v2568 = vsel %vm2560, %v2548, 0.0
        %v2569 = vadd.f32 %v2567, %v2568
        %v2570 = vsel %vm2560, %v2549, 0.0
        %v2571 = vadd.f32 %v2569, %v2570
        %v2572 = vsel %vm2560, %v2550, 0.0
        %v2573 = vadd.f32 %v2571, %v2572
        %v2574 = vsel %vm2560, %v2551, 0.0
        %v2575 = vadd.f32 %v2573, %v2574
        %v2576 = vsel %vm2560, %v2552, 0.0
        %v2577 = vadd.f32 %v2575, %v2576
        %v2578 = vsel %vm2560, %v2553, 0.0
        %v2579 = vadd.f32 %v2577, %v2578
        %v2580 = vsel %vm2560, %v2554, 0.0
        %v2581 = vadd.f32 %v2579, %v2580
        %v2582 = vsel %vm2560, %v2555, 0.0
        %v2583 = vadd.f32 %v2581, %v2582
        %v2584 = vsel %vm2560, %v2556, 0.0
        %v2585 = vadd.f32 %v2583, %v2584
        %v2586 = vsel %vm2560, %v2557, 0.0
        %v2587 = vadd.f32 %v2585, %v2586
        %v2588 = vsel %vm2560, %v2558, 0.0
        %v2589 = vadd.f32 %v2587, %v2588
        %v2590 = vsel %vm2560, %v2559, 0.0
        %v2591 = vadd.f32 %v2589, %v2590
        %v2592 = vrot.slane %v2591, 4
        %v2593 = vadd.f32 %v2591, %v2592
        %v2594 = vrot.slane %v2593, 2
        %v2595 = vadd.f32 %v2593, %v2594
        %v2596 = vrot.slane %v2595, 1
        %v2597 = vadd.f32 %v2595, %v2596
        %vm2598 = vcmask 516096
        %2599 = vst.msk [vmem:[%s476] sm:$0x1] %vm2598, %v2597
        %v2600 = vmul.f32 %v2544, %v2544
        %v2601 = vmul.f32 %v2545, %v2545
        %v2602 = vmul.f32 %v2546, %v2546
        %v2603 = vmul.f32 %v2547, %v2547
        %v2604 = vmul.f32 %v2548, %v2548
        %v2605 = vmul.f32 %v2549, %v2549
        %v2606 = vmul.f32 %v2550, %v2550
        %v2607 = vmul.f32 %v2551, %v2551
        %v2608 = vmul.f32 %v2552, %v2552
        %v2609 = vmul.f32 %v2553, %v2553
        %v2610 = vmul.f32 %v2554, %v2554
        %v2611 = vmul.f32 %v2555, %v2555
        %v2612 = vmul.f32 %v2556, %v2556
        %v2613 = vmul.f32 %v2557, %v2557
        %v2614 = vmul.f32 %v2558, %v2558
        %v2615 = vmul.f32 %v2559, %v2559
        %v2616 = vsel %vm2560, %v2600, 0.0
        %v2617 = vsel %vm2560, %v2601, 0.0
        %v2618 = vadd.f32 %v2616, %v2617
        %v2619 = vsel %vm2560, %v2602, 0.0
        %v2620 = vadd.f32 %v2618, %v2619
        %v2621 = vsel %vm2560, %v2603, 0.0
        %v2622 = vadd.f32 %v2620, %v2621
        %v2623 = vsel %vm2560, %v2604, 0.0
        %v2624 = vadd.f32 %v2622, %v2623
        %v2625 = vsel %vm2560, %v2605, 0.0
        %v2626 = vadd.f32 %v2624, %v2625
        %v2627 = vsel %vm2560, %v2606, 0.0
        %v2628 = vadd.f32 %v2626, %v2627
        %v2629 = vsel %vm2560, %v2607, 0.0
        %v2630 = vadd.f32 %v2628, %v2629
        %v2631 = vsel %vm2560, %v2608, 0.0
        %v2632 = vadd.f32 %v2630, %v2631
        %v2633 = vsel %vm2560, %v2609, 0.0
        %v2634 = vadd.f32 %v2632, %v2633
        %v2635 = vsel %vm2560, %v2610, 0.0
        %v2636 = vadd.f32 %v2634, %v2635
        %v2637 = vsel %vm2560, %v2611, 0.0
        %v2638 = vadd.f32 %v2636, %v2637
        %v2639 = vsel %vm2560, %v2612, 0.0
        %v2640 = vadd.f32 %v2638, %v2639
        %v2641 = vsel %vm2560, %v2613, 0.0
        %v2642 = vadd.f32 %v2640, %v2641
        %v2643 = vsel %vm2560, %v2614, 0.0
        %v2644 = vadd.f32 %v2642, %v2643
        %v2645 = vsel %vm2560, %v2615, 0.0
        %v2646 = vadd.f32 %v2644, %v2645
        %v2647 = vrot.slane %v2646, 4
        %v2648 = vadd.f32 %v2646, %v2647
        %v2649 = vrot.slane %v2648, 2
        %v2650 = vadd.f32 %v2648, %v2649
        %v2651 = vrot.slane %v2650, 1
        %v2652 = vadd.f32 %v2650, %v2651
        %2653 = vst.msk [vmem:[%s482] sm:$0x1] %vm2598, %v2652
        %s2654 = smul.u32 16, %s27
        %p2655 = scmp.lt.s32.totalorder %s2654, 95
        %s2656 = scalar_select %p2655, %s2654, 95
        %s2657 = smul.addr %s2656, 4
        %s2658 = scalar_lea.vmem %s7, %s2657
        %s2659 = sand.u32 %s262, 1
        %s2660 = scalar_lea.sflag [#allocation3], %s2659
        %s2661 = sand.u32 %s262, 1
        %s2662 = scalar_lea.vmem [#allocation2], %s2661
        %s2663 = sand.u32 %s288, 1
        %s2664 = scalar_lea.sflag [#allocation5], %s2663
        %s2665 = sand.u32 %s288, 1
        %s2666 = scalar_lea.vmem [#allocation4], %s2665
        // Predicated region
        $region49: #{tpu_custom_call.1} parent=47 // pred_check
          %p2667 = pneg %p246
        $region50: #{tpu_custom_call.1} parent=47 // pred_check_branch
          %2669 = sbr.rel (%p2667) target = $region52
        $region51: #{tpu_custom_call.1} parent=47 // pred_region
          %s2670 = smul.u32 16, %s27
        $region52: #{tpu_custom_call.1} parent=47 // pred_fallthru
          _
        // Predicated region
        $region53: #{tpu_custom_call.1} parent=47 // pred_check
          %p2671 = pneg %p272
        $region54: #{tpu_custom_call.1} parent=47 // pred_check_branch
          %2673 = sbr.rel (%p2671) target = $region56
        $region55: #{tpu_custom_call.1} parent=47 // pred_region
          %s2675 = ssub.s32 16, 16
          %2676 = vsyncadd %s2660, %s2675
          %s2677 = smul.addr %s27, 16
          %s2678 = scalar_lea.hbm %s8, %s2677
          %s2680 = sshll.u32 %s2662, 4
          %s2681 = int_to_ptr.vmem [resolvable:$true] %s2680
          %2683 = dma.vmem_to_hbm [thread:$0]  %s2681, 16, %s2678, %s2660
        $region56: #{tpu_custom_call.1} parent=47 // pred_fallthru
          _
        // Predicated region
        $region57: #{tpu_custom_call.1} parent=47 // pred_check
          %p2684 = pneg %p298
        $region58: #{tpu_custom_call.1} parent=47 // pred_check_branch
          %2686 = sbr.rel (%p2684) target = $region60
        $region59: #{tpu_custom_call.1} parent=47 // pred_region
          %s2688 = ssub.s32 16, 16
          %2689 = vsyncadd %s2664, %s2688
          %s2690 = smul.addr %s27, 16
          %s2691 = scalar_lea.hbm %s9, %s2690
          %s2693 = sshll.u32 %s2666, 4
          %s2694 = int_to_ptr.vmem [resolvable:$true] %s2693
          %2696 = dma.vmem_to_hbm [thread:$0]  %s2694, 16, %s2691, %s2664
        $region60: #{tpu_custom_call.1} parent=47 // pred_fallthru
          _
      $region48: #{tpu_custom_call.1} parent=5 // pred_fallthru
        _
      %p2697 = scmp.le.s32.totalorder 2, %s22
      // Predicated region
      $region61: #{tpu_custom_call.1} parent=5 // pred_check
        %p2698 = pneg %p2697
      $region62: #{tpu_custom_call.1} parent=5 // pred_check_branch
        %2700 = sbr.rel (%p2698) target = $region64
      $region63: #{tpu_custom_call.1} parent=5 // pred_region
        %s2701 = ssub.s32 %s22, 2
        // Predicated region
        $region65: #{tpu_custom_call.1} parent=63 // pred_check
          %p2702 = pneg %p252
        $region66: #{tpu_custom_call.1} parent=63 // pred_check_branch
          %2704 = sbr.rel (%p2702) target = $region68
        $region67: #{tpu_custom_call.1} parent=63 // pred_region
          %s2705 = smul.u32 16, %s28
          %p2706 = scmp.lt.s32.totalorder %s2705, 95
          %s2707 = scalar_select %p2706, %s2705, 95
          %s2708 = smul.addr %s2707, 4
          %s2709 = scalar_lea.vmem %s7, %s2708
        $region68: #{tpu_custom_call.1} parent=63 // pred_fallthru
          _
        // Predicated region
        $region69: #{tpu_custom_call.1} parent=63 // pred_check
          %p2710 = pneg %p278
        $region70: #{tpu_custom_call.1} parent=63 // pred_check_branch
          %2712 = sbr.rel (%p2710) target = $region72
        $region71: #{tpu_custom_call.1} parent=63 // pred_region
          %s2713 = sand.u32 %s263, 1
          %s2714 = scalar_lea.sflag [#allocation3], %s2713
          %s2715 = sand.u32 %s263, 1
          %s2716 = scalar_lea.vmem [#allocation2], %s2715
          %2717 = dma.done %s2714, 16
        $region72: #{tpu_custom_call.1} parent=63 // pred_fallthru
          _
        // Predicated region
        $region73: #{tpu_custom_call.1} parent=63 // pred_check
          %p2718 = pneg %p304
        $region74: #{tpu_custom_call.1} parent=63 // pred_check_branch
          %2720 = sbr.rel (%p2718) target = $region76
        $region75: #{tpu_custom_call.1} parent=63 // pred_region
          %s2721 = sand.u32 %s289, 1
          %s2722 = scalar_lea.sflag [#allocation5], %s2721
          %s2723 = sand.u32 %s289, 1
          %s2724 = scalar_lea.vmem [#allocation4], %s2723
          %2725 = dma.done %s2722, 16
        $region76: #{tpu_custom_call.1} parent=63 // pred_fallthru
          _
      $region64: #{tpu_custom_call.1} parent=5 // pred_fallthru
        _
    $region6: #{tpu_custom_call.1} parent=1 // loop_footer
      %s26 = sadd.s32 1, %s22
    $region7: #{tpu_custom_call.1} parent=1 // loop_footer_branch
      %21 = sbr.rel target = $region3
    $region8: #{tpu_custom_call.1} parent=1 // loop_exit
      _
    %2726 = vsyncpa [#allocation3], 1
    %s2727 = scalar_lea.sflag [#allocation3], 1
    %2728 = vsyncpa %s2727, 1
    %2729 = vsyncpa [#allocation5], 1
    %s2730 = scalar_lea.sflag [#allocation5], 1
    %2731 = vsyncpa %s2730, 1

</llo_original>
